<compile_context>
chip_gen: v7x
topology: tpu7x:2x2x1
jax: 0.10.0
libtpu: 0.0.40
codegen_flags: <defaults>
</compile_context>

<pallas_src>
import numpy as np
import jax
import jax.numpy as jnp
from jax import lax
from jax.experimental import pallas as pl
from jax.experimental.pallas import tpu as pltpu

N, CIN, COUT, H, W = 2, 4, 4, 16, 16
H2, W2 = 2 * H, 2 * W
HW, HW2 = H * W, H2 * W2
K = 3  # 3x3 convs

assert CIN == COUT, "UpResSupp's conv1 requires in_channels == out_channels"
assert W2 & (W2 - 1) == 0  # masks below use bitwise tricks for x = lane % W2


def _interp_matrix(n_in: int, n_out: int) -> np.ndarray:
    """Separable bilinear-interpolation matrix, align_corners=True (PyTorch)."""
    A = np.zeros((n_out, n_in), dtype=np.float32)
    if n_out == 1 or n_in == 1:
        A[:, 0] = 1.0
        return A
    scale = (n_in - 1) / (n_out - 1)
    for i in range(n_out):
        s = i * scale
        i0 = min(int(np.floor(s)), n_in - 1)
        i1 = min(i0 + 1, n_in - 1)
        f = s - i0
        A[i, i0] += 1.0 - f
        A[i, i1] += f
    return A


def upres_supp_kernel(x_ref, uk_ref, w1_ref, b1_ref, w2_ref, b23_ref, out_ref):
    f32 = jnp.float32
    bf16 = jnp.bfloat16

    # ---- bilinear upsample: one MXU matmul, result already lane-dense (CIN, 1024) ----
    xu = jnp.dot(x_ref[0].astype(bf16), uk_ref[...],
                 preferred_element_type=f32)                       # (CIN, HW2) f32

    # Boundary masks for the 3x3 taps, built ONCE and shared by both conv stages.
    lane = lax.broadcasted_iota(jnp.int32, (1, HW2), 1)
    xcoord = jnp.bitwise_and(lane, W2 - 1)                          # x = lane % W2
    y_ok = [lane >= W2, None, lane < HW2 - W2]                      # y+dy-1 in range
    x_ok = [xcoord >= 1, None, xcoord < W2 - 1]                     # x+dx-1 in range
    tap_masks = []
    for dy in range(K):
        for dx in range(K):
            ok = y_ok[dy]
            if x_ok[dx] is not None:
                ok = x_ok[dx] if ok is None else (ok & x_ok[dx])
            tap_masks.append(ok)

    def shifted_taps(planes):
        """planes: (C, HW2).  Returns (9*C, HW2); row (dy*3+dx)*C + c holds planes[c]
        shifted so lane (y*W2+x) reads planes[c, y+dy-1, x+dx-1] (zero outside the
        plane) -- i.e. the im2col rows of a 3x3 'same' convolution."""
        blocks = []
        for dy in range(K):
            for dx in range(K):
                s = (dy - 1) * W2 + (dx - 1)
                r = planes if s == 0 else jnp.roll(planes, -s, axis=1)
                ok = tap_masks[dy * K + dx]
                if ok is not None:
                    r = jnp.where(ok, r, 0.0)
                blocks.append(r)
        return jnp.concatenate(blocks, axis=0)

    # ---- conv1: 3x3 + bias + ReLU as one (COUT, 9*CIN) @ (9*CIN, 1024) matmul ----
    p1 = shifted_taps(xu)                                           # (9*CIN, HW2) f32
    y1 = jnp.dot(w1_ref[...], p1.astype(bf16),
                 preferred_element_type=f32) + b1_ref[...]
    y1 = jnp.maximum(y1, 0.0)                                       # (COUT, HW2) f32

    # ---- conv2 (3x3) with the 1x1 residual conv fused in, + bias, ReLU ----
    p2 = jnp.concatenate([shifted_taps(y1), xu], axis=0)            # (9*COUT+CIN, HW2)
    y2 = jnp.dot(w2_ref[...], p2.astype(bf16),
                 preferred_element_type=f32) + b23_ref[...]
    out_ref[0] = jnp.maximum(y2, 0.0)                               # lane-dense store


def upres_supp(x, params):
    w1, b1, w2, b2, w3, b3 = params
    bf16 = jnp.bfloat16

    # Fold the separable align_corners=True bilinear upsample into a single matrix:
    # vec_row(Ah @ X @ Aw^T) = kron(Ah, Aw) @ vec_row(X).
    ah = _interp_matrix(H, H2)                                      # (H2, H)
    aw = _interp_matrix(W, W2)                                      # (W2, W)
    ukT = jnp.asarray(np.kron(ah, aw).T, dtype=bf16)                # (HW, HW2)

    # Conv weights as small VMEM matmul blocks; column order matches shifted_taps()
    # patch-row order (dy, dx, c).  The 1x1 residual conv is appended to conv2.
    w1r = jnp.asarray(w1).transpose(0, 2, 3, 1).reshape(COUT, K * K * CIN).astype(bf16)
    w2r = jnp.asarray(w2).transpose(0, 2, 3, 1).reshape(COUT, K * K * COUT)
    w3r = jnp.asarray(w3).reshape(COUT, CIN)
    w2f = jnp.concatenate([w2r, w3r], axis=1).astype(bf16)          # (COUT, 9*COUT+CIN)
    b1c = jnp.asarray(b1).reshape(COUT, 1).astype(jnp.float32)
    b23c = (jnp.asarray(b2) + jnp.asarray(b3)).reshape(COUT, 1).astype(jnp.float32)

    x_flat = x.reshape(N, CIN, HW)

    out = pl.pallas_call(
        upres_supp_kernel,
        out_shape=jax.ShapeDtypeStruct((N, COUT, HW2), jnp.float32),
        grid=(N,),
        in_specs=[
            pl.BlockSpec((1, CIN, HW), lambda n: (n, 0, 0)),        # x, one image/step
            pl.BlockSpec((HW, HW2), lambda n: (0, 0)),              # interpolation matrix
            pl.BlockSpec((COUT, K * K * CIN), lambda n: (0, 0)),    # conv1 weights
            pl.BlockSpec((COUT, 1), lambda n: (0, 0)),              # conv1 bias
            pl.BlockSpec((COUT, K * K * COUT + CIN), lambda n: (0, 0)),  # conv2 + 1x1 weights
            pl.BlockSpec((COUT, 1), lambda n: (0, 0)),              # conv2 + 1x1 bias
        ],
        out_specs=pl.BlockSpec((1, COUT, HW2), lambda n: (n, 0, 0)),
        compiler_params=pltpu.CompilerParams(
            dimension_semantics=("parallel",)),                     # v7x: one image per TC
    )(x_flat, ukT, w1r, b1c, w2f, b23c)

    return out.reshape(N, COUT, H2, W2)


def upres_supp_ref(x, params):
    """Pure-JAX reference of the PyTorch forward (NCHW), near-exact f32."""
    w1, b1, w2, b2, w3, b3 = params
    ah = jnp.asarray(_interp_matrix(H, H2))
    aw = jnp.asarray(_interp_matrix(W, W2))
    xu = jnp.einsum('ah,nchw->ncaw', ah, x, precision=lax.Precision.HIGHEST)
    xu = jnp.einsum('bw,ncaw->ncab', aw, xu, precision=lax.Precision.HIGHEST)

    def conv(z, w, b, pad):
        y = lax.conv_general_dilated(
            z, w, (1, 1), ((pad, pad), (pad, pad)),
            dimension_numbers=('NCHW', 'OIHW', 'NCHW'),
            precision=lax.Precision.HIGHEST)
        return y + b[None, :, None, None]

    y = jax.nn.relu(conv(xu, w1, b1, 1))
    y = conv(y, w2, b2, 1)
    res = conv(xu, w3, b3, 0)
    return jax.nn.relu(y + res)


if __name__ == "__main__":
    key = jax.random.PRNGKey(0)
    kx, k1, k2, k3, kb1, kb2, kb3 = jax.random.split(key, 7)
    x = jax.random.normal(kx, (N, CIN, H, W), jnp.float32)
    w1 = jax.random.normal(k1, (COUT, CIN, K, K), jnp.float32) * 0.1
    b1 = jax.random.normal(kb1, (COUT,), jnp.float32) * 0.1
    w2 = jax.random.normal(k2, (COUT, COUT, K, K), jnp.float32) * 0.1
    b2 = jax.random.normal(kb2, (COUT,), jnp.float32) * 0.1
    w3 = jax.random.normal(k3, (COUT, CIN, 1, 1), jnp.float32) * 0.1
    b3 = jax.random.normal(kb3, (COUT,), jnp.float32) * 0.1
    params = (w1, b1, w2, b2, w3, b3)

    out = jax.block_until_ready(upres_supp(x, params))
    ref = jax.block_until_ready(upres_supp_ref(x, params))
    assert out.shape == (N, COUT, H2, W2), out.shape
    # Tolerance sized for single-pass bf16 MXU matmuls vs. HIGHEST-precision reference.
    if not np.allclose(np.asarray(out), np.asarray(ref), atol=2e-2, rtol=2e-2):
        raise AssertionError("Pallas kernel output mismatches JAX reference")
    print("KERNEL_OK")
</pallas_src>

<mosaic_0001>
module attributes {stable_mosaic.version = 11 : i64} {
  func.func @upres_supp_kernel(%arg0: i32, %arg1: memref<1x4x256xf32, #tpu.memory_space<vmem>>, %arg2: memref<256x1024xbf16, #tpu.memory_space<vmem>>, %arg3: memref<4x36xbf16, #tpu.memory_space<vmem>>, %arg4: memref<4x1xf32, #tpu.memory_space<vmem>>, %arg5: memref<4x40xbf16, #tpu.memory_space<vmem>>, %arg6: memref<4x1xf32, #tpu.memory_space<vmem>>, %arg7: memref<1x4x1024xf32, #tpu.memory_space<vmem>>) attributes {dimension_semantics = [#tpu.dimension_semantics<parallel>], iteration_bounds = array<i64: 2>, scalar_prefetch = 0 : i64, scratch_operands = 0 : i64, tpu.core_type = #tpu.core_type<tc>, window_params = [{transform_indices = @transform_0, window_bounds = array<i64: 1, 4, 256>}, {pipeline_mode = #tpu.pipeline_mode<synchronous>, transform_indices = @transform_1, window_bounds = array<i64: 256, 1024>}, {pipeline_mode = #tpu.pipeline_mode<synchronous>, transform_indices = @transform_2, window_bounds = array<i64: 4, 36>}, {pipeline_mode = #tpu.pipeline_mode<synchronous>, transform_indices = @transform_3, window_bounds = array<i64: 4, 1>}, {pipeline_mode = #tpu.pipeline_mode<synchronous>, transform_indices = @transform_4, window_bounds = array<i64: 4, 40>}, {pipeline_mode = #tpu.pipeline_mode<synchronous>, transform_indices = @transform_5, window_bounds = array<i64: 4, 1>}, {transform_indices = @transform_6, window_bounds = array<i64: 1, 4, 1024>}]} {
    %c0 = arith.constant 0 : index
    %c0_0 = arith.constant 0 : index
    %c0_1 = arith.constant 0 : index
    %0 = vector.load %arg1[%c0, %c0_0, %c0_1] : memref<1x4x256xf32, #tpu.memory_space<vmem>>, vector<1x4x256xf32>
    %1 = vector.shape_cast %0 : vector<1x4x256xf32> to vector<4x256xf32>
    %2 = arith.truncf %1 : vector<4x256xf32> to vector<4x256xbf16>
    %c0_2 = arith.constant 0 : index
    %c0_3 = arith.constant 0 : index
    %3 = vector.load %arg2[%c0_2, %c0_3] : memref<256x1024xbf16, #tpu.memory_space<vmem>>, vector<256x1024xbf16>
    %cst = arith.constant dense<0.000000e+00> : vector<4x1024xf32>
    %4 = tpu.matmul %2, %3, %cst {dimension_numbers = #tpu.dot_dimension_numbers<[1], [0], [0], [1], [0, 0, 1, 1], [], []>} : vector<4x256xbf16>, vector<256x1024xbf16>, vector<4x1024xf32> -> vector<4x1024xf32>
    %5 = tpu.iota {dimensions = array<i32: 1>} : vector<1x1024xi32>
    %c31_i32 = arith.constant 31 : i32
    %6 = vector.broadcast %c31_i32 : i32 to vector<1x1024xi32>
    %7 = arith.andi %5, %6 : vector<1x1024xi32>
    %c32_i32 = arith.constant 32 : i32
    %8 = vector.broadcast %c32_i32 : i32 to vector<1x1024xi32>
    %9 = arith.cmpi sge, %5, %8 : vector<1x1024xi32>
    %c992_i32 = arith.constant 992 : i32
    %10 = vector.broadcast %c992_i32 : i32 to vector<1x1024xi32>
    %11 = arith.cmpi slt, %5, %10 : vector<1x1024xi32>
    %c1_i32 = arith.constant 1 : i32
    %12 = vector.broadcast %c1_i32 : i32 to vector<1x1024xi32>
    %13 = arith.cmpi sge, %7, %12 : vector<1x1024xi32>
    %c31_i32_4 = arith.constant 31 : i32
    %14 = vector.broadcast %c31_i32_4 : i32 to vector<1x1024xi32>
    %15 = arith.cmpi slt, %7, %14 : vector<1x1024xi32>
    %16 = arith.andi %9, %13 : vector<1x1024xi1>
    %17 = arith.andi %9, %15 : vector<1x1024xi1>
    %18 = arith.andi %11, %13 : vector<1x1024xi1>
    %19 = arith.andi %11, %15 : vector<1x1024xi1>
    %20 = vector.extract_strided_slice %4 {offsets = [0, 991], sizes = [4, 33], strides = [1, 1]} : vector<4x1024xf32> to vector<4x33xf32>
    %21 = vector.extract_strided_slice %4 {offsets = [0, 0], sizes = [4, 991], strides = [1, 1]} : vector<4x1024xf32> to vector<4x991xf32>
    %22 = tpu.concatenate %20, %21 in 1 : vector<4x33xf32>, vector<4x991xf32> -> vector<4x1024xf32>
    %cst_5 = arith.constant 0.000000e+00 : f32
    %23 = vector.shape_cast %16 : vector<1x1024xi1> to vector<1x1024xi1>
    %24 = vector.broadcast %23 : vector<1x1024xi1> to vector<4x1024xi1>
    %25 = vector.broadcast %cst_5 : f32 to vector<4x1024xf32>
    %26 = arith.select %24, %22, %25 : vector<4x1024xi1>, vector<4x1024xf32>
    %27 = vector.extract_strided_slice %4 {offsets = [0, 992], sizes = [4, 32], strides = [1, 1]} : vector<4x1024xf32> to vector<4x32xf32>
    %28 = vector.extract_strided_slice %4 {offsets = [0, 0], sizes = [4, 992], strides = [1, 1]} : vector<4x1024xf32> to vector<4x992xf32>
    %29 = tpu.concatenate %27, %28 in 1 : vector<4x32xf32>, vector<4x992xf32> -> vector<4x1024xf32>
    %cst_6 = arith.constant 0.000000e+00 : f32
    %30 = vector.shape_cast %9 : vector<1x1024xi1> to vector<1x1024xi1>
    %31 = vector.broadcast %30 : vector<1x1024xi1> to vector<4x1024xi1>
    %32 = vector.broadcast %cst_6 : f32 to vector<4x1024xf32>
    %33 = arith.select %31, %29, %32 : vector<4x1024xi1>, vector<4x1024xf32>
    %34 = vector.extract_strided_slice %4 {offsets = [0, 993], sizes = [4, 31], strides = [1, 1]} : vector<4x1024xf32> to vector<4x31xf32>
    %35 = vector.extract_strided_slice %4 {offsets = [0, 0], sizes = [4, 993], strides = [1, 1]} : vector<4x1024xf32> to vector<4x993xf32>
    %36 = tpu.concatenate %34, %35 in 1 : vector<4x31xf32>, vector<4x993xf32> -> vector<4x1024xf32>
    %cst_7 = arith.constant 0.000000e+00 : f32
    %37 = vector.shape_cast %17 : vector<1x1024xi1> to vector<1x1024xi1>
    %38 = vector.broadcast %37 : vector<1x1024xi1> to vector<4x1024xi1>
    %39 = vector.broadcast %cst_7 : f32 to vector<4x1024xf32>
    %40 = arith.select %38, %36, %39 : vector<4x1024xi1>, vector<4x1024xf32>
    %41 = vector.extract_strided_slice %4 {offsets = [0, 1023], sizes = [4, 1], strides = [1, 1]} : vector<4x1024xf32> to vector<4x1xf32>
    %42 = vector.extract_strided_slice %4 {offsets = [0, 0], sizes = [4, 1023], strides = [1, 1]} : vector<4x1024xf32> to vector<4x1023xf32>
    %43 = tpu.concatenate %41, %42 in 1 : vector<4x1xf32>, vector<4x1023xf32> -> vector<4x1024xf32>
    %cst_8 = arith.constant 0.000000e+00 : f32
    %44 = vector.shape_cast %13 : vector<1x1024xi1> to vector<1x1024xi1>
    %45 = vector.broadcast %44 : vector<1x1024xi1> to vector<4x1024xi1>
    %46 = vector.broadcast %cst_8 : f32 to vector<4x1024xf32>
    %47 = arith.select %45, %43, %46 : vector<4x1024xi1>, vector<4x1024xf32>
    %48 = vector.extract_strided_slice %4 {offsets = [0, 1], sizes = [4, 1023], strides = [1, 1]} : vector<4x1024xf32> to vector<4x1023xf32>
    %49 = vector.extract_strided_slice %4 {offsets = [0, 0], sizes = [4, 1], strides = [1, 1]} : vector<4x1024xf32> to vector<4x1xf32>
    %50 = tpu.concatenate %48, %49 in 1 : vector<4x1023xf32>, vector<4x1xf32> -> vector<4x1024xf32>
    %cst_9 = arith.constant 0.000000e+00 : f32
    %51 = vector.shape_cast %15 : vector<1x1024xi1> to vector<1x1024xi1>
    %52 = vector.broadcast %51 : vector<1x1024xi1> to vector<4x1024xi1>
    %53 = vector.broadcast %cst_9 : f32 to vector<4x1024xf32>
    %54 = arith.select %52, %50, %53 : vector<4x1024xi1>, vector<4x1024xf32>
    %55 = vector.extract_strided_slice %4 {offsets = [0, 31], sizes = [4, 993], strides = [1, 1]} : vector<4x1024xf32> to vector<4x993xf32>
    %56 = vector.extract_strided_slice %4 {offsets = [0, 0], sizes = [4, 31], strides = [1, 1]} : vector<4x1024xf32> to vector<4x31xf32>
    %57 = tpu.concatenate %55, %56 in 1 : vector<4x993xf32>, vector<4x31xf32> -> vector<4x1024xf32>
    %cst_10 = arith.constant 0.000000e+00 : f32
    %58 = vector.shape_cast %18 : vector<1x1024xi1> to vector<1x1024xi1>
    %59 = vector.broadcast %58 : vector<1x1024xi1> to vector<4x1024xi1>
    %60 = vector.broadcast %cst_10 : f32 to vector<4x1024xf32>
    %61 = arith.select %59, %57, %60 : vector<4x1024xi1>, vector<4x1024xf32>
    %62 = vector.extract_strided_slice %4 {offsets = [0, 32], sizes = [4, 992], strides = [1, 1]} : vector<4x1024xf32> to vector<4x992xf32>
    %63 = vector.extract_strided_slice %4 {offsets = [0, 0], sizes = [4, 32], strides = [1, 1]} : vector<4x1024xf32> to vector<4x32xf32>
    %64 = tpu.concatenate %62, %63 in 1 : vector<4x992xf32>, vector<4x32xf32> -> vector<4x1024xf32>
    %cst_11 = arith.constant 0.000000e+00 : f32
    %65 = vector.shape_cast %11 : vector<1x1024xi1> to vector<1x1024xi1>
    %66 = vector.broadcast %65 : vector<1x1024xi1> to vector<4x1024xi1>
    %67 = vector.broadcast %cst_11 : f32 to vector<4x1024xf32>
    %68 = arith.select %66, %64, %67 : vector<4x1024xi1>, vector<4x1024xf32>
    %69 = vector.extract_strided_slice %4 {offsets = [0, 33], sizes = [4, 991], strides = [1, 1]} : vector<4x1024xf32> to vector<4x991xf32>
    %70 = vector.extract_strided_slice %4 {offsets = [0, 0], sizes = [4, 33], strides = [1, 1]} : vector<4x1024xf32> to vector<4x33xf32>
    %71 = tpu.concatenate %69, %70 in 1 : vector<4x991xf32>, vector<4x33xf32> -> vector<4x1024xf32>
    %cst_12 = arith.constant 0.000000e+00 : f32
    %72 = vector.shape_cast %19 : vector<1x1024xi1> to vector<1x1024xi1>
    %73 = vector.broadcast %72 : vector<1x1024xi1> to vector<4x1024xi1>
    %74 = vector.broadcast %cst_12 : f32 to vector<4x1024xf32>
    %75 = arith.select %73, %71, %74 : vector<4x1024xi1>, vector<4x1024xf32>
    %76 = tpu.concatenate %26, %33, %40, %47, %4, %54, %61, %68, %75 in 0 : vector<4x1024xf32>, vector<4x1024xf32>, vector<4x1024xf32>, vector<4x1024xf32>, vector<4x1024xf32>, vector<4x1024xf32>, vector<4x1024xf32>, vector<4x1024xf32>, vector<4x1024xf32> -> vector<36x1024xf32>
    %c0_13 = arith.constant 0 : index
    %c0_14 = arith.constant 0 : index
    %77 = vector.load %arg3[%c0_13, %c0_14] : memref<4x36xbf16, #tpu.memory_space<vmem>>, vector<4x36xbf16>
    %78 = arith.truncf %76 : vector<36x1024xf32> to vector<36x1024xbf16>
    %cst_15 = arith.constant dense<0.000000e+00> : vector<4x1024xf32>
    %79 = tpu.matmul %77, %78, %cst_15 {dimension_numbers = #tpu.dot_dimension_numbers<[1], [0], [0], [1], [0, 0, 1, 1], [], []>} : vector<4x36xbf16>, vector<36x1024xbf16>, vector<4x1024xf32> -> vector<4x1024xf32>
    %c0_16 = arith.constant 0 : index
    %c0_17 = arith.constant 0 : index
    %80 = vector.load %arg4[%c0_16, %c0_17] : memref<4x1xf32, #tpu.memory_space<vmem>>, vector<4x1xf32>
    %81 = vector.broadcast %80 : vector<4x1xf32> to vector<4x1024xf32>
    %82 = arith.addf %79, %81 : vector<4x1024xf32>
    %cst_18 = arith.constant 0.000000e+00 : f32
    %83 = vector.broadcast %cst_18 : f32 to vector<4x1024xf32>
    %84 = arith.maximumf %82, %83 : vector<4x1024xf32>
    %85 = vector.extract_strided_slice %84 {offsets = [0, 991], sizes = [4, 33], strides = [1, 1]} : vector<4x1024xf32> to vector<4x33xf32>
    %86 = vector.extract_strided_slice %84 {offsets = [0, 0], sizes = [4, 991], strides = [1, 1]} : vector<4x1024xf32> to vector<4x991xf32>
    %87 = tpu.concatenate %85, %86 in 1 : vector<4x33xf32>, vector<4x991xf32> -> vector<4x1024xf32>
    %cst_19 = arith.constant 0.000000e+00 : f32
    %88 = vector.shape_cast %16 : vector<1x1024xi1> to vector<1x1024xi1>
    %89 = vector.broadcast %88 : vector<1x1024xi1> to vector<4x1024xi1>
    %90 = vector.broadcast %cst_19 : f32 to vector<4x1024xf32>
    %91 = arith.select %89, %87, %90 : vector<4x1024xi1>, vector<4x1024xf32>
    %92 = vector.extract_strided_slice %84 {offsets = [0, 992], sizes = [4, 32], strides = [1, 1]} : vector<4x1024xf32> to vector<4x32xf32>
    %93 = vector.extract_strided_slice %84 {offsets = [0, 0], sizes = [4, 992], strides = [1, 1]} : vector<4x1024xf32> to vector<4x992xf32>
    %94 = tpu.concatenate %92, %93 in 1 : vector<4x32xf32>, vector<4x992xf32> -> vector<4x1024xf32>
    %cst_20 = arith.constant 0.000000e+00 : f32
    %95 = vector.shape_cast %9 : vector<1x1024xi1> to vector<1x1024xi1>
    %96 = vector.broadcast %95 : vector<1x1024xi1> to vector<4x1024xi1>
    %97 = vector.broadcast %cst_20 : f32 to vector<4x1024xf32>
    %98 = arith.select %96, %94, %97 : vector<4x1024xi1>, vector<4x1024xf32>
    %99 = vector.extract_strided_slice %84 {offsets = [0, 993], sizes = [4, 31], strides = [1, 1]} : vector<4x1024xf32> to vector<4x31xf32>
    %100 = vector.extract_strided_slice %84 {offsets = [0, 0], sizes = [4, 993], strides = [1, 1]} : vector<4x1024xf32> to vector<4x993xf32>
    %101 = tpu.concatenate %99, %100 in 1 : vector<4x31xf32>, vector<4x993xf32> -> vector<4x1024xf32>
    %cst_21 = arith.constant 0.000000e+00 : f32
    %102 = vector.shape_cast %17 : vector<1x1024xi1> to vector<1x1024xi1>
    %103 = vector.broadcast %102 : vector<1x1024xi1> to vector<4x1024xi1>
    %104 = vector.broadcast %cst_21 : f32 to vector<4x1024xf32>
    %105 = arith.select %103, %101, %104 : vector<4x1024xi1>, vector<4x1024xf32>
    %106 = vector.extract_strided_slice %84 {offsets = [0, 1023], sizes = [4, 1], strides = [1, 1]} : vector<4x1024xf32> to vector<4x1xf32>
    %107 = vector.extract_strided_slice %84 {offsets = [0, 0], sizes = [4, 1023], strides = [1, 1]} : vector<4x1024xf32> to vector<4x1023xf32>
    %108 = tpu.concatenate %106, %107 in 1 : vector<4x1xf32>, vector<4x1023xf32> -> vector<4x1024xf32>
    %cst_22 = arith.constant 0.000000e+00 : f32
    %109 = vector.shape_cast %13 : vector<1x1024xi1> to vector<1x1024xi1>
    %110 = vector.broadcast %109 : vector<1x1024xi1> to vector<4x1024xi1>
    %111 = vector.broadcast %cst_22 : f32 to vector<4x1024xf32>
    %112 = arith.select %110, %108, %111 : vector<4x1024xi1>, vector<4x1024xf32>
    %113 = vector.extract_strided_slice %84 {offsets = [0, 1], sizes = [4, 1023], strides = [1, 1]} : vector<4x1024xf32> to vector<4x1023xf32>
    %114 = vector.extract_strided_slice %84 {offsets = [0, 0], sizes = [4, 1], strides = [1, 1]} : vector<4x1024xf32> to vector<4x1xf32>
    %115 = tpu.concatenate %113, %114 in 1 : vector<4x1023xf32>, vector<4x1xf32> -> vector<4x1024xf32>
    %cst_23 = arith.constant 0.000000e+00 : f32
    %116 = vector.shape_cast %15 : vector<1x1024xi1> to vector<1x1024xi1>
    %117 = vector.broadcast %116 : vector<1x1024xi1> to vector<4x1024xi1>
    %118 = vector.broadcast %cst_23 : f32 to vector<4x1024xf32>
    %119 = arith.select %117, %115, %118 : vector<4x1024xi1>, vector<4x1024xf32>
    %120 = vector.extract_strided_slice %84 {offsets = [0, 31], sizes = [4, 993], strides = [1, 1]} : vector<4x1024xf32> to vector<4x993xf32>
    %121 = vector.extract_strided_slice %84 {offsets = [0, 0], sizes = [4, 31], strides = [1, 1]} : vector<4x1024xf32> to vector<4x31xf32>
    %122 = tpu.concatenate %120, %121 in 1 : vector<4x993xf32>, vector<4x31xf32> -> vector<4x1024xf32>
    %cst_24 = arith.constant 0.000000e+00 : f32
    %123 = vector.shape_cast %18 : vector<1x1024xi1> to vector<1x1024xi1>
    %124 = vector.broadcast %123 : vector<1x1024xi1> to vector<4x1024xi1>
    %125 = vector.broadcast %cst_24 : f32 to vector<4x1024xf32>
    %126 = arith.select %124, %122, %125 : vector<4x1024xi1>, vector<4x1024xf32>
    %127 = vector.extract_strided_slice %84 {offsets = [0, 32], sizes = [4, 992], strides = [1, 1]} : vector<4x1024xf32> to vector<4x992xf32>
    %128 = vector.extract_strided_slice %84 {offsets = [0, 0], sizes = [4, 32], strides = [1, 1]} : vector<4x1024xf32> to vector<4x32xf32>
    %129 = tpu.concatenate %127, %128 in 1 : vector<4x992xf32>, vector<4x32xf32> -> vector<4x1024xf32>
    %cst_25 = arith.constant 0.000000e+00 : f32
    %130 = vector.shape_cast %11 : vector<1x1024xi1> to vector<1x1024xi1>
    %131 = vector.broadcast %130 : vector<1x1024xi1> to vector<4x1024xi1>
    %132 = vector.broadcast %cst_25 : f32 to vector<4x1024xf32>
    %133 = arith.select %131, %129, %132 : vector<4x1024xi1>, vector<4x1024xf32>
    %134 = vector.extract_strided_slice %84 {offsets = [0, 33], sizes = [4, 991], strides = [1, 1]} : vector<4x1024xf32> to vector<4x991xf32>
    %135 = vector.extract_strided_slice %84 {offsets = [0, 0], sizes = [4, 33], strides = [1, 1]} : vector<4x1024xf32> to vector<4x33xf32>
    %136 = tpu.concatenate %134, %135 in 1 : vector<4x991xf32>, vector<4x33xf32> -> vector<4x1024xf32>
    %cst_26 = arith.constant 0.000000e+00 : f32
    %137 = vector.shape_cast %19 : vector<1x1024xi1> to vector<1x1024xi1>
    %138 = vector.broadcast %137 : vector<1x1024xi1> to vector<4x1024xi1>
    %139 = vector.broadcast %cst_26 : f32 to vector<4x1024xf32>
    %140 = arith.select %138, %136, %139 : vector<4x1024xi1>, vector<4x1024xf32>
    %141 = tpu.concatenate %91, %98, %105, %112, %84, %119, %126, %133, %140 in 0 : vector<4x1024xf32>, vector<4x1024xf32>, vector<4x1024xf32>, vector<4x1024xf32>, vector<4x1024xf32>, vector<4x1024xf32>, vector<4x1024xf32>, vector<4x1024xf32>, vector<4x1024xf32> -> vector<36x1024xf32>
    %142 = tpu.concatenate %141, %4 in 0 : vector<36x1024xf32>, vector<4x1024xf32> -> vector<40x1024xf32>
    %c0_27 = arith.constant 0 : index
    %c0_28 = arith.constant 0 : index
    %143 = vector.load %arg5[%c0_27, %c0_28] : memref<4x40xbf16, #tpu.memory_space<vmem>>, vector<4x40xbf16>
    %144 = arith.truncf %142 : vector<40x1024xf32> to vector<40x1024xbf16>
    %cst_29 = arith.constant dense<0.000000e+00> : vector<4x1024xf32>
    %145 = tpu.matmul %143, %144, %cst_29 {dimension_numbers = #tpu.dot_dimension_numbers<[1], [0], [0], [1], [0, 0, 1, 1], [], []>} : vector<4x40xbf16>, vector<40x1024xbf16>, vector<4x1024xf32> -> vector<4x1024xf32>
    %c0_30 = arith.constant 0 : index
    %c0_31 = arith.constant 0 : index
    %146 = vector.load %arg6[%c0_30, %c0_31] : memref<4x1xf32, #tpu.memory_space<vmem>>, vector<4x1xf32>
    %147 = vector.broadcast %146 : vector<4x1xf32> to vector<4x1024xf32>
    %148 = arith.addf %145, %147 : vector<4x1024xf32>
    %cst_32 = arith.constant 0.000000e+00 : f32
    %149 = vector.broadcast %cst_32 : f32 to vector<4x1024xf32>
    %150 = arith.maximumf %148, %149 : vector<4x1024xf32>
    %c0_33 = arith.constant 0 : index
    %c0_34 = arith.constant 0 : index
    %c0_35 = arith.constant 0 : index
    %151 = vector.load %arg7[%c0_33, %c0_34, %c0_35] : memref<1x4x1024xf32, #tpu.memory_space<vmem>>, vector<1x4x1024xf32>
    %152 = vector.shape_cast %151 : vector<1x4x1024xf32> to vector<4x1024xf32>
    %153 = vector.shape_cast %150 : vector<4x1024xf32> to vector<1x4x1024xf32>
    tpu.vector_store %arg7[%c0_33, %c0_34, %c0_35], %153 {strides = array<i32>} : memref<1x4x1024xf32, #tpu.memory_space<vmem>>, vector<1x4x1024xf32>,
    return
  }
  func.func @transform_0(%arg0: i32) -> (i32, i32, i32) {
    %c0_i32 = arith.constant 0 : i32
    %c0_i32_0 = arith.constant 0 : i32
    %c0_i32_1 = arith.constant 0 : i32
    return %arg0, %c0_i32, %c0_i32_0 : i32, i32, i32
  }
  func.func @transform_1(%arg0: i32) -> (i32, i32) {
    %c0_i32 = arith.constant 0 : i32
    %c0_i32_0 = arith.constant 0 : i32
    %c0_i32_1 = arith.constant 0 : i32
    return %c0_i32, %c0_i32_0 : i32, i32
  }
  func.func @transform_2(%arg0: i32) -> (i32, i32) {
    %c0_i32 = arith.constant 0 : i32
    %c0_i32_0 = arith.constant 0 : i32
    %c0_i32_1 = arith.constant 0 : i32
    return %c0_i32, %c0_i32_0 : i32, i32
  }
  func.func @transform_3(%arg0: i32) -> (i32, i32) {
    %c0_i32 = arith.constant 0 : i32
    %c0_i32_0 = arith.constant 0 : i32
    %c0_i32_1 = arith.constant 0 : i32
    return %c0_i32, %c0_i32_0 : i32, i32
  }
  func.func @transform_4(%arg0: i32) -> (i32, i32) {
    %c0_i32 = arith.constant 0 : i32
    %c0_i32_0 = arith.constant 0 : i32
    %c0_i32_1 = arith.constant 0 : i32
    return %c0_i32, %c0_i32_0 : i32, i32
  }
  func.func @transform_5(%arg0: i32) -> (i32, i32) {
    %c0_i32 = arith.constant 0 : i32
    %c0_i32_0 = arith.constant 0 : i32
    %c0_i32_1 = arith.constant 0 : i32
    return %c0_i32, %c0_i32_0 : i32, i32
  }
  func.func @transform_6(%arg0: i32) -> (i32, i32, i32) {
    %c0_i32 = arith.constant 0 : i32
    %c0_i32_0 = arith.constant 0 : i32
    %c0_i32_1 = arith.constant 0 : i32
    return %arg0, %c0_i32, %c0_i32_0 : i32, i32, i32
  }
}

</mosaic_0001>

<llo_original>
// kernel: tpu_custom_call.1
$region0: #{tpu_custom_call.1}
  #allocation0 [shape = 'u32[]', space=smem, size = 0x4, offset = 0x4, fixed_abs, tag = 'smem constant byte address 0x4 - core index']
  #allocation1 [shape = 'u32[144,128]{1,0:T(1,128)}', space=vmem, size = 0x12000, scoped, tag = 'internal scratch']
  %s0 = inlined_call_operand.hbm [shape: f32[2,4,256], index: 0, kind: input, shape index: {}]
  %s1 = inlined_call_operand.hbm [shape: bf16[256,1024], index: 1, kind: input, shape index: {}]
  %s2 = inlined_call_operand.vmem [shape: bf16[4,36], index: 2, kind: input, shape index: {}]
  %s3 = inlined_call_operand.vmem [shape: f32[4,1], index: 3, kind: input, shape index: {}]
  %s4 = inlined_call_operand.vmem [shape: bf16[4,40], index: 4, kind: input, shape index: {}]
  %s5 = inlined_call_operand.vmem [shape: f32[4,1], index: 5, kind: input, shape index: {}]
  %s6 = inlined_call_operand.hbm [shape: f32[2,4,1024], index: 6, kind: output, shape index: {}]
  %s7 = sld [smem:[#allocation0]]
  $region65: #{tpu_custom_call.1} parent=0
    _
  %s9 = ssub.s32 1, %s7
  %s10 = scalar_select 0, %s9, %s7
  $region1: #{tpu_custom_call.1} parent=0
    #allocation2 [shape = 'u8[8192]{0}', space=vmem, size = 0x2000, scoped, tag = 'input window, operand 0']
    #allocation3 [shape = 's32[2]{0}', space=sflag, size = 0x8, scoped, tag = 'scoped memory for tpu_custom_call.1']
    #allocation4 [shape = 's32[2]{0}', space=sflag, size = 0x8, scoped, tag = 'scoped memory for tpu_custom_call.1']
    #allocation5 [shape = 'u8[524288]{0}', space=vmem, size = 0x80000, scoped, tag = 'input window, operand 1, single buffered']
    #allocation6 [shape = 's32[1]{0}', space=sflag, size = 0x4, scoped, tag = 'scoped memory for tpu_custom_call.1']
    #allocation7 [shape = 'u8[32768]{0}', space=vmem, size = 0x8000, scoped, tag = 'output window, operand 0']
    %11 = vsyncpa [#allocation3], 0
    %s12 = scalar_lea.sflag [#allocation3], 1
    %13 = vsyncpa %s12, 0
    %14 = vsyncpa [#allocation6], 0
    %15 = vsyncpa [#allocation4], 0
    %s16 = scalar_lea.sflag [#allocation4], 1
    %17 = vsyncpa %s16, 0
    loop: start=0, step=1, limit=4
    $region2: #{tpu_custom_call.1} parent=1 // loop_pre_header
      _
    $region3: #{tpu_custom_call.1} parent=1 // loop_header
      %s19 = sphi 0, %s23
      %p20 = scmp.ge.s32.totalorder %s19, 4
      %s29 = sphi 0, %s31
      %s32 = sphi 0, %s29
      %s33 = sphi 0, %s32
      %s49 = sphi 0, %s33
      %s53 = sphi 0, %s53
      %s55 = sphi 0, %s53
      %s56 = sphi 0, %s55
      %s70 = sphi 0, %s56
      %s74 = sphi 0, %s74
      %s76 = sphi 0, %s74
      %s77 = sphi 0, %s76
      %s91 = sphi 0, %s77
      %s95 = sphi 0, %s95
      %s97 = sphi 0, %s95
      %s98 = sphi 0, %s97
      %s112 = sphi 0, %s98
      %s116 = sphi 0, %s116
      %s118 = sphi 0, %s116
      %s119 = sphi 0, %s118
      %s133 = sphi 0, %s119
      %s137 = sphi 0, %s137
      %s139 = sphi 0, %s137
      %s140 = sphi 0, %s139
      %s154 = sphi 0, %s140
      %s160 = sphi 0, %s162
      %s163 = sphi 0, %s160
      %s164 = sphi 0, %s163
      %s180 = sphi 0, %s164
    $region4: #{tpu_custom_call.1} parent=1 // loop_header_branch
      %22 = sbr.rel (%p20) target = $region8
    $region5: #{tpu_custom_call.1} parent=1 // loop_body
      %s24 = ssub.s32 %s19, 1
      %s25 = ssub.s32 %s19, 2
      %s26 = sadd.s32 %s19, 1
      %s27 = ssub.s32 %s19, %s26
      %p28 = scmp.eq.s32.totalorder %s27, 0
      %s30 = sadd.s32 %s29, 1
      %s31 = scalar_select %p28, %s29, %s30
      %p34 = pneg %p28
      %p35 = scmp.eq.s32.totalorder %s19, 1
      %p36 = por %p34, %p35
      %p37 = scmp.ne.s32.totalorder %s29, %s32
      %p38 = scmp.eq.s32.totalorder %s19, 0
      %p39 = por %p37, %p38
      %p40 = scmp.ne.s32.totalorder %s29, %s32
      %p41 = scmp.eq.s32.totalorder %s24, 1
      %p42 = por %p40, %p41
      %p43 = scmp.ne.s32.totalorder %s32, %s33
      %p44 = scmp.eq.s32.totalorder %s24, 0
      %p45 = por %p43, %p44
      %p46 = scmp.ne.s32.totalorder %s32, %s33
      %p47 = scmp.eq.s32.totalorder %s25, 1
      %p48 = por %p46, %p47
      %p50 = scmp.ne.s32.totalorder %s33, %s49
      %p51 = scmp.eq.s32.totalorder %s25, 0
      %p52 = por %p50, %p51
      %s54 = sadd.s32 %s53, 1
      %p57 = scmp.eq.s32.totalorder %s19, 1
      %p58 = scmp.ne.s32.totalorder %s53, %s55
      %p59 = scmp.eq.s32.totalorder %s19, 0
      %p60 = por %p58, %p59
      %p61 = scmp.ne.s32.totalorder %s53, %s55
      %p62 = scmp.eq.s32.totalorder %s24, 1
      %p63 = por %p61, %p62
      %p64 = scmp.ne.s32.totalorder %s55, %s56
      %p65 = scmp.eq.s32.totalorder %s24, 0
      %p66 = por %p64, %p65
      %p67 = scmp.ne.s32.totalorder %s55, %s56
      %p68 = scmp.eq.s32.totalorder %s25, 1
      %p69 = por %p67, %p68
      %p71 = scmp.ne.s32.totalorder %s56, %s70
      %p72 = scmp.eq.s32.totalorder %s25, 0
      %p73 = por %p71, %p72
      %s75 = sadd.s32 %s74, 1
      %p78 = scmp.eq.s32.totalorder %s19, 1
      %p79 = scmp.ne.s32.totalorder %s74, %s76
      %p80 = scmp.eq.s32.totalorder %s19, 0
      %p81 = por %p79, %p80
      %p82 = scmp.ne.s32.totalorder %s74, %s76
      %p83 = scmp.eq.s32.totalorder %s24, 1
      %p84 = por %p82, %p83
      %p85 = scmp.ne.s32.totalorder %s76, %s77
      %p86 = scmp.eq.s32.totalorder %s24, 0
      %p87 = por %p85, %p86
      %p88 = scmp.ne.s32.totalorder %s76, %s77
      %p89 = scmp.eq.s32.totalorder %s25, 1
      %p90 = por %p88, %p89
      %p92 = scmp.ne.s32.totalorder %s77, %s91
      %p93 = scmp.eq.s32.totalorder %s25, 0
      %p94 = por %p92, %p93
      %s96 = sadd.s32 %s95, 1
      %p99 = scmp.eq.s32.totalorder %s19, 1
      %p100 = scmp.ne.s32.totalorder %s95, %s97
      %p101 = scmp.eq.s32.totalorder %s19, 0
      %p102 = por %p100, %p101
      %p103 = scmp.ne.s32.totalorder %s95, %s97
      %p104 = scmp.eq.s32.totalorder %s24, 1
      %p105 = por %p103, %p104
      %p106 = scmp.ne.s32.totalorder %s97, %s98
      %p107 = scmp.eq.s32.totalorder %s24, 0
      %p108 = por %p106, %p107
      %p109 = scmp.ne.s32.totalorder %s97, %s98
      %p110 = scmp.eq.s32.totalorder %s25, 1
      %p111 = por %p109, %p110
      %p113 = scmp.ne.s32.totalorder %s98, %s112
      %p114 = scmp.eq.s32.totalorder %s25, 0
      %p115 = por %p113, %p114
      %s117 = sadd.s32 %s116, 1
      %p120 = scmp.eq.s32.totalorder %s19, 1
      %p121 = scmp.ne.s32.totalorder %s116, %s118
      %p122 = scmp.eq.s32.totalorder %s19, 0
      %p123 = por %p121, %p122
      %p124 = scmp.ne.s32.totalorder %s116, %s118
      %p125 = scmp.eq.s32.totalorder %s24, 1
      %p126 = por %p124, %p125
      %p127 = scmp.ne.s32.totalorder %s118, %s119
      %p128 = scmp.eq.s32.totalorder %s24, 0
      %p129 = por %p127, %p128
      %p130 = scmp.ne.s32.totalorder %s118, %s119
      %p131 = scmp.eq.s32.totalorder %s25, 1
      %p132 = por %p130, %p131
      %p134 = scmp.ne.s32.totalorder %s119, %s133
      %p135 = scmp.eq.s32.totalorder %s25, 0
      %p136 = por %p134, %p135
      %s138 = sadd.s32 %s137, 1
      %p141 = scmp.eq.s32.totalorder %s19, 1
      %p142 = scmp.ne.s32.totalorder %s137, %s139
      %p143 = scmp.eq.s32.totalorder %s19, 0
      %p144 = por %p142, %p143
      %p145 = scmp.ne.s32.totalorder %s137, %s139
      %p146 = scmp.eq.s32.totalorder %s24, 1
      %p147 = por %p145, %p146
      %p148 = scmp.ne.s32.totalorder %s139, %s140
      %p149 = scmp.eq.s32.totalorder %s24, 0
      %p150 = por %p148, %p149
      %p151 = scmp.ne.s32.totalorder %s139, %s140
      %p152 = scmp.eq.s32.totalorder %s25, 1
      %p153 = por %p151, %p152
      %p155 = scmp.ne.s32.totalorder %s140, %s154
      %p156 = scmp.eq.s32.totalorder %s25, 0
      %p157 = por %p155, %p156
      %s158 = ssub.s32 %s19, %s26
      %p159 = scmp.eq.s32.totalorder %s158, 0
      %s161 = sadd.s32 %s160, 1
      %s162 = scalar_select %p159, %s160, %s161
      %p165 = pneg %p159
      %p166 = scmp.eq.s32.totalorder %s19, 1
      %p167 = por %p165, %p166
      %p168 = scmp.ne.s32.totalorder %s160, %s163
      %p169 = scmp.eq.s32.totalorder %s19, 0
      %p170 = por %p168, %p169
      %p171 = scmp.ne.s32.totalorder %s160, %s163
      %p172 = scmp.eq.s32.totalorder %s24, 1
      %p173 = por %p171, %p172
      %p174 = scmp.ne.s32.totalorder %s163, %s164
      %p175 = scmp.eq.s32.totalorder %s24, 0
      %p176 = por %p174, %p175
      %p177 = scmp.ne.s32.totalorder %s163, %s164
      %p178 = scmp.eq.s32.totalorder %s25, 1
      %p179 = por %p177, %p178
      %p181 = scmp.ne.s32.totalorder %s164, %s180
      %p182 = scmp.eq.s32.totalorder %s25, 0
      %p183 = por %p181, %p182
      %p184 = scmp.le.s32.totalorder 1, %s19
      %p185 = scmp.lt.s32.totalorder %s19, 3
      %p186 = pnand %p184, %p185
      %p187 = pneg %p186
      // Predicated region
      $region9: #{tpu_custom_call.1} parent=5 // pred_check
        _
      $region10: #{tpu_custom_call.1} parent=5 // pred_check_branch
        %189 = sbr.rel (%p186) target = $region12
      $region11: #{tpu_custom_call.1} parent=5 // pred_region
        %s190 = ssub.s32 %s19, 1
        // Predicated region
        $region13: #{tpu_custom_call.1} parent=11 // pred_check
          %p191 = pneg %p66
        $region14: #{tpu_custom_call.1} parent=11 // pred_check_branch
          %193 = sbr.rel (%p191) target = $region16
        $region15: #{tpu_custom_call.1} parent=11 // pred_region
          %s195 = ssub.s32 16384, 16384
          %196 = vsyncadd [#allocation6], %s195
          %s197 = sshll.u32 [#allocation5], 4
          %s198 = int_to_ptr.vmem [resolvable:$true] %s197
          %203 = dma.hbm_to_vmem [thread:$0]  %s1, 16384, %s198, [#allocation6], 512, 512, 32
        $region16: #{tpu_custom_call.1} parent=11 // pred_fallthru
          _
        // Predicated region
        $region17: #{tpu_custom_call.1} parent=11 // pred_check
          %p204 = pneg %p87
        $region18: #{tpu_custom_call.1} parent=11 // pred_check_branch
          %206 = sbr.rel (%p204) target = $region20
        $region19: #{tpu_custom_call.1} parent=11 // pred_region
          _
        $region20: #{tpu_custom_call.1} parent=11 // pred_fallthru
          _
        // Predicated region
        $region21: #{tpu_custom_call.1} parent=11 // pred_check
          %p207 = pneg %p108
        $region22: #{tpu_custom_call.1} parent=11 // pred_check_branch
          %209 = sbr.rel (%p207) target = $region24
        $region23: #{tpu_custom_call.1} parent=11 // pred_region
          _
        $region24: #{tpu_custom_call.1} parent=11 // pred_fallthru
          _
        // Predicated region
        $region25: #{tpu_custom_call.1} parent=11 // pred_check
          %p210 = pneg %p129
        $region26: #{tpu_custom_call.1} parent=11 // pred_check_branch
          %212 = sbr.rel (%p210) target = $region28
        $region27: #{tpu_custom_call.1} parent=11 // pred_region
          _
        $region28: #{tpu_custom_call.1} parent=11 // pred_fallthru
          _
        // Predicated region
        $region29: #{tpu_custom_call.1} parent=11 // pred_check
          %p213 = pneg %p150
        $region30: #{tpu_custom_call.1} parent=11 // pred_check_branch
          %215 = sbr.rel (%p213) target = $region32
        $region31: #{tpu_custom_call.1} parent=11 // pred_region
          _
        $region32: #{tpu_custom_call.1} parent=11 // pred_fallthru
          _
      $region12: #{tpu_custom_call.1} parent=5 // pred_fallthru
        _
      %p216 = scmp.lt.s32.totalorder %s19, 2
      // Predicated region
      $region33: #{tpu_custom_call.1} parent=5 // pred_check
        %p217 = pneg %p216
      $region34: #{tpu_custom_call.1} parent=5 // pred_check_branch
        %219 = sbr.rel (%p217) target = $region36
      $region35: #{tpu_custom_call.1} parent=5 // pred_region
        // Predicated region
        $region37: #{tpu_custom_call.1} parent=35 // pred_check
          %p220 = pneg %p39
        $region38: #{tpu_custom_call.1} parent=35 // pred_check_branch
          %222 = sbr.rel (%p220) target = $region40
        $region39: #{tpu_custom_call.1} parent=35 // pred_region
          %s223 = sand.u32 %s29, 1
          %s224 = scalar_lea.sflag [#allocation3], %s223
          %s225 = sand.u32 %s29, 1
          %s226 = smul.addr %s225, 8
          %s227 = scalar_lea.vmem [#allocation2], %s226
          %s229 = ssub.s32 128, 128
          %230 = vsyncadd %s224, %s229
          %s231 = smul.addr %s19, 2
          %s232 = smul.addr %s231, 64
          %s233 = scalar_lea.hbm %s0, %s232
          %s235 = sshll.u32 %s227, 4
          %s236 = int_to_ptr.vmem [resolvable:$true] %s235
          %238 = dma.hbm_to_vmem [thread:$0]  %s233, 128, %s236, %s224
        $region40: #{tpu_custom_call.1} parent=35 // pred_fallthru
          _
      $region36: #{tpu_custom_call.1} parent=5 // pred_fallthru
        _
      %p239 = scmp.le.s32.totalorder 1, %s19
      %p240 = scmp.lt.s32.totalorder %s19, 3
      %p241 = pnand %p239, %p240
      %p242 = pneg %p241
      // Predicated region
      $region41: #{tpu_custom_call.1} parent=5 // pred_check
        _
      $region42: #{tpu_custom_call.1} parent=5 // pred_check_branch
        %244 = sbr.rel (%p241) target = $region44
      $region43: #{tpu_custom_call.1} parent=5 // pred_region
        %s245 = ssub.s32 %s19, 1
        %s246 = sand.u32 %s32, 1
        %s247 = scalar_lea.sflag [#allocation3], %s246
        %s248 = sand.u32 %s32, 1
        %s249 = smul.addr %s248, 8
        %s250 = scalar_lea.vmem [#allocation2], %s249
        // Predicated region
        $region45: #{tpu_custom_call.1} parent=43 // pred_check
          %p251 = pneg %p45
        $region46: #{tpu_custom_call.1} parent=43 // pred_check_branch
          %253 = sbr.rel (%p251) target = $region48
        $region47: #{tpu_custom_call.1} parent=43 // pred_region
          %254 = dma.done %s247, 128
        $region48: #{tpu_custom_call.1} parent=43 // pred_fallthru
          _
        // Predicated region
        $region49: #{tpu_custom_call.1} parent=43 // pred_check
          %p255 = pneg %p66
        $region50: #{tpu_custom_call.1} parent=43 // pred_check_branch
          %257 = sbr.rel (%p255) target = $region52
        $region51: #{tpu_custom_call.1} parent=43 // pred_region
          %258 = dma.done [#allocation6], 16384
        $region52: #{tpu_custom_call.1} parent=43 // pred_fallthru
          _
        %s259 = sand.u32 %s32, 1
        %s260 = scalar_lea.sflag [#allocation3], %s259
        %s261 = sand.u32 %s32, 1
        %s262 = smul.addr %s261, 8
        %s263 = scalar_lea.vmem [#allocation2], %s262
        %p264 = pneg %p45
        %p265 = pneg %p42
        %p266 = pneg %p66
        %p267 = pneg %p63
        %p268 = pneg %p87
        %p269 = pneg %p84
        %p270 = pneg %p108
        %p271 = pneg %p105
        %p272 = pneg %p129
        %p273 = pneg %p126
        %p274 = pneg %p150
        %p275 = pneg %p147
        %p276 = pneg %p176
        %p277 = pneg %p173
        %s278 = sand.u32 %s163, 1
        %s279 = scalar_lea.sflag [#allocation4], %s278
        %s280 = sand.u32 %s163, 1
        %s281 = smul.addr %s280, 32
        %s282 = scalar_lea.vmem [#allocation7], %s281
        %v284 = vld [vmem:[%s250] sm:$0xff]
        %v286 = vcombine.high %v284, %v284
        %v288 = vpack.c.bf16 %v284, %v284
        %v289 = vpack.c.bf16 %v286, %v286
        %v290 = vld [vmem:[#allocation5] sm:$0xff]
        %v291 = vld [vmem:[#allocation5 + $0x8] sm:$0xff]
        %v292 = vld [vmem:[#allocation5 + $0x10] sm:$0xff]
        %v293 = vld [vmem:[#allocation5 + $0x18] sm:$0xff]
        %v294 = vld [vmem:[#allocation5 + $0x20] sm:$0xff]
        %v295 = vld [vmem:[#allocation5 + $0x28] sm:$0xff]
        %v296 = vld [vmem:[#allocation5 + $0x30] sm:$0xff]
        %v297 = vld [vmem:[#allocation5 + $0x38] sm:$0xff]
        %v298 = vld [vmem:[#allocation5 + $0x40] sm:$0xff]
        %v299 = vld [vmem:[#allocation5 + $0x48] sm:$0xff]
        %v300 = vld [vmem:[#allocation5 + $0x50] sm:$0xff]
        %v301 = vld [vmem:[#allocation5 + $0x58] sm:$0xff]
        %v302 = vld [vmem:[#allocation5 + $0x60] sm:$0xff]
        %v303 = vld [vmem:[#allocation5 + $0x68] sm:$0xff]
        %v304 = vld [vmem:[#allocation5 + $0x70] sm:$0xff]
        %v305 = vld [vmem:[#allocation5 + $0x78] sm:$0xff]
        %v306 = vld [vmem:[#allocation5 + $0x80] sm:$0xff]
        %v307 = vld [vmem:[#allocation5 + $0x88] sm:$0xff]
        %v308 = vld [vmem:[#allocation5 + $0x90] sm:$0xff]
        %v309 = vld [vmem:[#allocation5 + $0x98] sm:$0xff]
        %v310 = vld [vmem:[#allocation5 + $0xa0] sm:$0xff]
        %v311 = vld [vmem:[#allocation5 + $0xa8] sm:$0xff]
        %v312 = vld [vmem:[#allocation5 + $0xb0] sm:$0xff]
        %v313 = vld [vmem:[#allocation5 + $0xb8] sm:$0xff]
        %v314 = vld [vmem:[#allocation5 + $0xc0] sm:$0xff]
        %v315 = vld [vmem:[#allocation5 + $0xc8] sm:$0xff]
        %v316 = vld [vmem:[#allocation5 + $0xd0] sm:$0xff]
        %v317 = vld [vmem:[#allocation5 + $0xd8] sm:$0xff]
        %v318 = vld [vmem:[#allocation5 + $0xe0] sm:$0xff]
        %v319 = vld [vmem:[#allocation5 + $0xe8] sm:$0xff]
        %v320 = vld [vmem:[#allocation5 + $0xf0] sm:$0xff]
        %v321 = vld [vmem:[#allocation5 + $0xf8] sm:$0xff]
        %v322 = vld [vmem:[#allocation5 + $0x100] sm:$0xff]
        %v323 = vld [vmem:[#allocation5 + $0x108] sm:$0xff]
        %v324 = vld [vmem:[#allocation5 + $0x110] sm:$0xff]
        %v325 = vld [vmem:[#allocation5 + $0x118] sm:$0xff]
        %v326 = vld [vmem:[#allocation5 + $0x120] sm:$0xff]
        %v327 = vld [vmem:[#allocation5 + $0x128] sm:$0xff]
        %v328 = vld [vmem:[#allocation5 + $0x130] sm:$0xff]
        %v329 = vld [vmem:[#allocation5 + $0x138] sm:$0xff]
        %v330 = vld [vmem:[#allocation5 + $0x140] sm:$0xff]
        %v331 = vld [vmem:[#allocation5 + $0x148] sm:$0xff]
        %v332 = vld [vmem:[#allocation5 + $0x150] sm:$0xff]
        %v333 = vld [vmem:[#allocation5 + $0x158] sm:$0xff]
        %v334 = vld [vmem:[#allocation5 + $0x160] sm:$0xff]
        %v335 = vld [vmem:[#allocation5 + $0x168] sm:$0xff]
        %v336 = vld [vmem:[#allocation5 + $0x170] sm:$0xff]
        %v337 = vld [vmem:[#allocation5 + $0x178] sm:$0xff]
        %v338 = vld [vmem:[#allocation5 + $0x180] sm:$0xff]
        %v339 = vld [vmem:[#allocation5 + $0x188] sm:$0xff]
        %v340 = vld [vmem:[#allocation5 + $0x190] sm:$0xff]
        %v341 = vld [vmem:[#allocation5 + $0x198] sm:$0xff]
        %v342 = vld [vmem:[#allocation5 + $0x1a0] sm:$0xff]
        %v343 = vld [vmem:[#allocation5 + $0x1a8] sm:$0xff]
        %v344 = vld [vmem:[#allocation5 + $0x1b0] sm:$0xff]
        %v345 = vld [vmem:[#allocation5 + $0x1b8] sm:$0xff]
        %v346 = vld [vmem:[#allocation5 + $0x1c0] sm:$0xff]
        %v347 = vld [vmem:[#allocation5 + $0x1c8] sm:$0xff]
        %v348 = vld [vmem:[#allocation5 + $0x1d0] sm:$0xff]
        %v349 = vld [vmem:[#allocation5 + $0x1d8] sm:$0xff]
        %v350 = vld [vmem:[#allocation5 + $0x1e0] sm:$0xff]
        %v351 = vld [vmem:[#allocation5 + $0x1e8] sm:$0xff]
        %v352 = vld [vmem:[#allocation5 + $0x1f0] sm:$0xff]
        %v353 = vld [vmem:[#allocation5 + $0x1f8] sm:$0xff]
        %v354 = vld [vmem:[#allocation5 + $0x200] sm:$0xff]
        %v355 = vld [vmem:[#allocation5 + $0x208] sm:$0xff]
        %v356 = vld [vmem:[#allocation5 + $0x210] sm:$0xff]
        %v357 = vld [vmem:[#allocation5 + $0x218] sm:$0xff]
        %v358 = vld [vmem:[#allocation5 + $0x220] sm:$0xff]
        %v359 = vld [vmem:[#allocation5 + $0x228] sm:$0xff]
        %v360 = vld [vmem:[#allocation5 + $0x230] sm:$0xff]
        %v361 = vld [vmem:[#allocation5 + $0x238] sm:$0xff]
        %v362 = vld [vmem:[#allocation5 + $0x240] sm:$0xff]
        %v363 = vld [vmem:[#allocation5 + $0x248] sm:$0xff]
        %v364 = vld [vmem:[#allocation5 + $0x250] sm:$0xff]
        %v365 = vld [vmem:[#allocation5 + $0x258] sm:$0xff]
        %v366 = vld [vmem:[#allocation5 + $0x260] sm:$0xff]
        %v367 = vld [vmem:[#allocation5 + $0x268] sm:$0xff]
        %v368 = vld [vmem:[#allocation5 + $0x270] sm:$0xff]
        %v369 = vld [vmem:[#allocation5 + $0x278] sm:$0xff]
        %v370 = vld [vmem:[#allocation5 + $0x280] sm:$0xff]
        %v371 = vld [vmem:[#allocation5 + $0x288] sm:$0xff]
        %v372 = vld [vmem:[#allocation5 + $0x290] sm:$0xff]
        %v373 = vld [vmem:[#allocation5 + $0x298] sm:$0xff]
        %v374 = vld [vmem:[#allocation5 + $0x2a0] sm:$0xff]
        %v375 = vld [vmem:[#allocation5 + $0x2a8] sm:$0xff]
        %v376 = vld [vmem:[#allocation5 + $0x2b0] sm:$0xff]
        %v377 = vld [vmem:[#allocation5 + $0x2b8] sm:$0xff]
        %v378 = vld [vmem:[#allocation5 + $0x2c0] sm:$0xff]
        %v379 = vld [vmem:[#allocation5 + $0x2c8] sm:$0xff]
        %v380 = vld [vmem:[#allocation5 + $0x2d0] sm:$0xff]
        %v381 = vld [vmem:[#allocation5 + $0x2d8] sm:$0xff]
        %v382 = vld [vmem:[#allocation5 + $0x2e0] sm:$0xff]
        %v383 = vld [vmem:[#allocation5 + $0x2e8] sm:$0xff]
        %v384 = vld [vmem:[#allocation5 + $0x2f0] sm:$0xff]
        %v385 = vld [vmem:[#allocation5 + $0x2f8] sm:$0xff]
        %v386 = vld [vmem:[#allocation5 + $0x300] sm:$0xff]
        %v387 = vld [vmem:[#allocation5 + $0x308] sm:$0xff]
        %v388 = vld [vmem:[#allocation5 + $0x310] sm:$0xff]
        %v389 = vld [vmem:[#allocation5 + $0x318] sm:$0xff]
        %v390 = vld [vmem:[#allocation5 + $0x320] sm:$0xff]
        %v391 = vld [vmem:[#allocation5 + $0x328] sm:$0xff]
        %v392 = vld [vmem:[#allocation5 + $0x330] sm:$0xff]
        %v393 = vld [vmem:[#allocation5 + $0x338] sm:$0xff]
        %v394 = vld [vmem:[#allocation5 + $0x340] sm:$0xff]
        %v395 = vld [vmem:[#allocation5 + $0x348] sm:$0xff]
        %v396 = vld [vmem:[#allocation5 + $0x350] sm:$0xff]
        %v397 = vld [vmem:[#allocation5 + $0x358] sm:$0xff]
        %v398 = vld [vmem:[#allocation5 + $0x360] sm:$0xff]
        %v399 = vld [vmem:[#allocation5 + $0x368] sm:$0xff]
        %v400 = vld [vmem:[#allocation5 + $0x370] sm:$0xff]
        %v401 = vld [vmem:[#allocation5 + $0x378] sm:$0xff]
        %v402 = vld [vmem:[#allocation5 + $0x380] sm:$0xff]
        %v403 = vld [vmem:[#allocation5 + $0x388] sm:$0xff]
        %v404 = vld [vmem:[#allocation5 + $0x390] sm:$0xff]
        %v405 = vld [vmem:[#allocation5 + $0x398] sm:$0xff]
        %v406 = vld [vmem:[#allocation5 + $0x3a0] sm:$0xff]
        %v407 = vld [vmem:[#allocation5 + $0x3a8] sm:$0xff]
        %v408 = vld [vmem:[#allocation5 + $0x3b0] sm:$0xff]
        %v409 = vld [vmem:[#allocation5 + $0x3b8] sm:$0xff]
        %v410 = vld [vmem:[#allocation5 + $0x3c0] sm:$0xff]
        %v411 = vld [vmem:[#allocation5 + $0x3c8] sm:$0xff]
        %v412 = vld [vmem:[#allocation5 + $0x3d0] sm:$0xff]
        %v413 = vld [vmem:[#allocation5 + $0x3d8] sm:$0xff]
        %v414 = vld [vmem:[#allocation5 + $0x3e0] sm:$0xff]
        %v415 = vld [vmem:[#allocation5 + $0x3e8] sm:$0xff]
        %v416 = vld [vmem:[#allocation5 + $0x3f0] sm:$0xff]
        %v417 = vld [vmem:[#allocation5 + $0x3f8] sm:$0xff]
        %v546 = vunpack.c.l.b16 %v290
        %v547 = vunpack.c.h.b16 %v290
        %v548 = vunpack.c.l.b16 %v291
        %v549 = vunpack.c.h.b16 %v291
        %v550 = vunpack.c.l.b16 %v292
        %v551 = vunpack.c.h.b16 %v292
        %v552 = vunpack.c.l.b16 %v293
        %v553 = vunpack.c.h.b16 %v293
        %v554 = vunpack.c.l.b16 %v294
        %v555 = vunpack.c.h.b16 %v294
        %v556 = vunpack.c.l.b16 %v295
        %v557 = vunpack.c.h.b16 %v295
        %v558 = vunpack.c.l.b16 %v296
        %v559 = vunpack.c.h.b16 %v296
        %v560 = vunpack.c.l.b16 %v297
        %v561 = vunpack.c.h.b16 %v297
        %v562 = vunpack.c.l.b16 %v298
        %v563 = vunpack.c.h.b16 %v298
        %v564 = vunpack.c.l.b16 %v299
        %v565 = vunpack.c.h.b16 %v299
        %v566 = vunpack.c.l.b16 %v300
        %v567 = vunpack.c.h.b16 %v300
        %v568 = vunpack.c.l.b16 %v301
        %v569 = vunpack.c.h.b16 %v301
        %v570 = vunpack.c.l.b16 %v302
        %v571 = vunpack.c.h.b16 %v302
        %v572 = vunpack.c.l.b16 %v303
        %v573 = vunpack.c.h.b16 %v303
        %v574 = vunpack.c.l.b16 %v304
        %v575 = vunpack.c.h.b16 %v304
        %v576 = vunpack.c.l.b16 %v305
        %v577 = vunpack.c.h.b16 %v305
        %v578 = vunpack.c.l.b16 %v306
        %v579 = vunpack.c.h.b16 %v306
        %v580 = vunpack.c.l.b16 %v307
        %v581 = vunpack.c.h.b16 %v307
        %v582 = vunpack.c.l.b16 %v308
        %v583 = vunpack.c.h.b16 %v308
        %v584 = vunpack.c.l.b16 %v309
        %v585 = vunpack.c.h.b16 %v309
        %v586 = vunpack.c.l.b16 %v310
        %v587 = vunpack.c.h.b16 %v310
        %v588 = vunpack.c.l.b16 %v311
        %v589 = vunpack.c.h.b16 %v311
        %v590 = vunpack.c.l.b16 %v312
        %v591 = vunpack.c.h.b16 %v312
        %v592 = vunpack.c.l.b16 %v313
        %v593 = vunpack.c.h.b16 %v313
        %v594 = vunpack.c.l.b16 %v314
        %v595 = vunpack.c.h.b16 %v314
        %v596 = vunpack.c.l.b16 %v315
        %v597 = vunpack.c.h.b16 %v315
        %v598 = vunpack.c.l.b16 %v316
        %v599 = vunpack.c.h.b16 %v316
        %v600 = vunpack.c.l.b16 %v317
        %v601 = vunpack.c.h.b16 %v317
        %v602 = vunpack.c.l.b16 %v318
        %v603 = vunpack.c.h.b16 %v318
        %v604 = vunpack.c.l.b16 %v319
        %v605 = vunpack.c.h.b16 %v319
        %v606 = vunpack.c.l.b16 %v320
        %v607 = vunpack.c.h.b16 %v320
        %v608 = vunpack.c.l.b16 %v321
        %v609 = vunpack.c.h.b16 %v321
        %v610 = vunpack.c.l.b16 %v322
        %v611 = vunpack.c.h.b16 %v322
        %v612 = vunpack.c.l.b16 %v323
        %v613 = vunpack.c.h.b16 %v323
        %v614 = vunpack.c.l.b16 %v324
        %v615 = vunpack.c.h.b16 %v324
        %v616 = vunpack.c.l.b16 %v325
        %v617 = vunpack.c.h.b16 %v325
        %v618 = vunpack.c.l.b16 %v326
        %v619 = vunpack.c.h.b16 %v326
        %v620 = vunpack.c.l.b16 %v327
        %v621 = vunpack.c.h.b16 %v327
        %v622 = vunpack.c.l.b16 %v328
        %v623 = vunpack.c.h.b16 %v328
        %v624 = vunpack.c.l.b16 %v329
        %v625 = vunpack.c.h.b16 %v329
        %v626 = vunpack.c.l.b16 %v330
        %v627 = vunpack.c.h.b16 %v330
        %v628 = vunpack.c.l.b16 %v331
        %v629 = vunpack.c.h.b16 %v331
        %v630 = vunpack.c.l.b16 %v332
        %v631 = vunpack.c.h.b16 %v332
        %v632 = vunpack.c.l.b16 %v333
        %v633 = vunpack.c.h.b16 %v333
        %v634 = vunpack.c.l.b16 %v334
        %v635 = vunpack.c.h.b16 %v334
        %v636 = vunpack.c.l.b16 %v335
        %v637 = vunpack.c.h.b16 %v335
        %v638 = vunpack.c.l.b16 %v336
        %v639 = vunpack.c.h.b16 %v336
        %v640 = vunpack.c.l.b16 %v337
        %v641 = vunpack.c.h.b16 %v337
        %v642 = vunpack.c.l.b16 %v338
        %v643 = vunpack.c.h.b16 %v338
        %v644 = vunpack.c.l.b16 %v339
        %v645 = vunpack.c.h.b16 %v339
        %v646 = vunpack.c.l.b16 %v340
        %v647 = vunpack.c.h.b16 %v340
        %v648 = vunpack.c.l.b16 %v341
        %v649 = vunpack.c.h.b16 %v341
        %v650 = vunpack.c.l.b16 %v342
        %v651 = vunpack.c.h.b16 %v342
        %v652 = vunpack.c.l.b16 %v343
        %v653 = vunpack.c.h.b16 %v343
        %v654 = vunpack.c.l.b16 %v344
        %v655 = vunpack.c.h.b16 %v344
        %v656 = vunpack.c.l.b16 %v345
        %v657 = vunpack.c.h.b16 %v345
        %v658 = vunpack.c.l.b16 %v346
        %v659 = vunpack.c.h.b16 %v346
        %v660 = vunpack.c.l.b16 %v347
        %v661 = vunpack.c.h.b16 %v347
        %v662 = vunpack.c.l.b16 %v348
        %v663 = vunpack.c.h.b16 %v348
        %v664 = vunpack.c.l.b16 %v349
        %v665 = vunpack.c.h.b16 %v349
        %v666 = vunpack.c.l.b16 %v350
        %v667 = vunpack.c.h.b16 %v350
        %v668 = vunpack.c.l.b16 %v351
        %v669 = vunpack.c.h.b16 %v351
        %v670 = vunpack.c.l.b16 %v352
        %v671 = vunpack.c.h.b16 %v352
        %v672 = vunpack.c.l.b16 %v353
        %v673 = vunpack.c.h.b16 %v353
        %v674 = vunpack.c.l.b16 %v354
        %v675 = vunpack.c.h.b16 %v354
        %v676 = vunpack.c.l.b16 %v355
        %v677 = vunpack.c.h.b16 %v355
        %v678 = vunpack.c.l.b16 %v356
        %v679 = vunpack.c.h.b16 %v356
        %v680 = vunpack.c.l.b16 %v357
        %v681 = vunpack.c.h.b16 %v357
        %v682 = vunpack.c.l.b16 %v358
        %v683 = vunpack.c.h.b16 %v358
        %v684 = vunpack.c.l.b16 %v359
        %v685 = vunpack.c.h.b16 %v359
        %v686 = vunpack.c.l.b16 %v360
        %v687 = vunpack.c.h.b16 %v360
        %v688 = vunpack.c.l.b16 %v361
        %v689 = vunpack.c.h.b16 %v361
        %v690 = vunpack.c.l.b16 %v362
        %v691 = vunpack.c.h.b16 %v362
        %v692 = vunpack.c.l.b16 %v363
        %v693 = vunpack.c.h.b16 %v363
        %v694 = vunpack.c.l.b16 %v364
        %v695 = vunpack.c.h.b16 %v364
        %v696 = vunpack.c.l.b16 %v365
        %v697 = vunpack.c.h.b16 %v365
        %v698 = vunpack.c.l.b16 %v366
        %v699 = vunpack.c.h.b16 %v366
        %v700 = vunpack.c.l.b16 %v367
        %v701 = vunpack.c.h.b16 %v367
        %v702 = vunpack.c.l.b16 %v368
        %v703 = vunpack.c.h.b16 %v368
        %v704 = vunpack.c.l.b16 %v369
        %v705 = vunpack.c.h.b16 %v369
        %v706 = vunpack.c.l.b16 %v370
        %v707 = vunpack.c.h.b16 %v370
        %v708 = vunpack.c.l.b16 %v371
        %v709 = vunpack.c.h.b16 %v371
        %v710 = vunpack.c.l.b16 %v372
        %v711 = vunpack.c.h.b16 %v372
        %v712 = vunpack.c.l.b16 %v373
        %v713 = vunpack.c.h.b16 %v373
        %v714 = vunpack.c.l.b16 %v374
        %v715 = vunpack.c.h.b16 %v374
        %v716 = vunpack.c.l.b16 %v375
        %v717 = vunpack.c.h.b16 %v375
        %v718 = vunpack.c.l.b16 %v376
        %v719 = vunpack.c.h.b16 %v376
        %v720 = vunpack.c.l.b16 %v377
        %v721 = vunpack.c.h.b16 %v377
        %v722 = vunpack.c.l.b16 %v378
        %v723 = vunpack.c.h.b16 %v378
        %v724 = vunpack.c.l.b16 %v379
        %v725 = vunpack.c.h.b16 %v379
        %v726 = vunpack.c.l.b16 %v380
        %v727 = vunpack.c.h.b16 %v380
        %v728 = vunpack.c.l.b16 %v381
        %v729 = vunpack.c.h.b16 %v381
        %v730 = vunpack.c.l.b16 %v382
        %v731 = vunpack.c.h.b16 %v382
        %v732 = vunpack.c.l.b16 %v383
        %v733 = vunpack.c.h.b16 %v383
        %v734 = vunpack.c.l.b16 %v384
        %v735 = vunpack.c.h.b16 %v384
        %v736 = vunpack.c.l.b16 %v385
        %v737 = vunpack.c.h.b16 %v385
        %v738 = vunpack.c.l.b16 %v386
        %v739 = vunpack.c.h.b16 %v386
        %v740 = vunpack.c.l.b16 %v387
        %v741 = vunpack.c.h.b16 %v387
        %v742 = vunpack.c.l.b16 %v388
        %v743 = vunpack.c.h.b16 %v388
        %v744 = vunpack.c.l.b16 %v389
        %v745 = vunpack.c.h.b16 %v389
        %v746 = vunpack.c.l.b16 %v390
        %v747 = vunpack.c.h.b16 %v390
        %v748 = vunpack.c.l.b16 %v391
        %v749 = vunpack.c.h.b16 %v391
        %v750 = vunpack.c.l.b16 %v392
        %v751 = vunpack.c.h.b16 %v392
        %v752 = vunpack.c.l.b16 %v393
        %v753 = vunpack.c.h.b16 %v393
        %v754 = vunpack.c.l.b16 %v394
        %v755 = vunpack.c.h.b16 %v394
        %v756 = vunpack.c.l.b16 %v395
        %v757 = vunpack.c.h.b16 %v395
        %v758 = vunpack.c.l.b16 %v396
        %v759 = vunpack.c.h.b16 %v396
        %v760 = vunpack.c.l.b16 %v397
        %v761 = vunpack.c.h.b16 %v397
        %v762 = vunpack.c.l.b16 %v398
        %v763 = vunpack.c.h.b16 %v398
        %v764 = vunpack.c.l.b16 %v399
        %v765 = vunpack.c.h.b16 %v399
        %v766 = vunpack.c.l.b16 %v400
        %v767 = vunpack.c.h.b16 %v400
        %v768 = vunpack.c.l.b16 %v401
        %v769 = vunpack.c.h.b16 %v401
        %v770 = vunpack.c.l.b16 %v402
        %v771 = vunpack.c.h.b16 %v402
        %v772 = vunpack.c.l.b16 %v403
        %v773 = vunpack.c.h.b16 %v403
        %v774 = vunpack.c.l.b16 %v404
        %v775 = vunpack.c.h.b16 %v404
        %v776 = vunpack.c.l.b16 %v405
        %v777 = vunpack.c.h.b16 %v405
        %v778 = vunpack.c.l.b16 %v406
        %v779 = vunpack.c.h.b16 %v406
        %v780 = vunpack.c.l.b16 %v407
        %v781 = vunpack.c.h.b16 %v407
        %v782 = vunpack.c.l.b16 %v408
        %v783 = vunpack.c.h.b16 %v408
        %v784 = vunpack.c.l.b16 %v409
        %v785 = vunpack.c.h.b16 %v409
        %v786 = vunpack.c.l.b16 %v410
        %v787 = vunpack.c.h.b16 %v410
        %v788 = vunpack.c.l.b16 %v411
        %v789 = vunpack.c.h.b16 %v411
        %v790 = vunpack.c.l.b16 %v412
        %v791 = vunpack.c.h.b16 %v412
        %v792 = vunpack.c.l.b16 %v413
        %v793 = vunpack.c.h.b16 %v413
        %v794 = vunpack.c.l.b16 %v414
        %v795 = vunpack.c.h.b16 %v414
        %v796 = vunpack.c.l.b16 %v415
        %v797 = vunpack.c.h.b16 %v415
        %v798 = vunpack.c.l.b16 %v416
        %v799 = vunpack.c.h.b16 %v416
        %v800 = vunpack.c.l.b16 %v417
        %v801 = vunpack.c.h.b16 %v417
        %v802 = vpack.c.b16 %v554, %v546
        %v803 = vpack.c.b16 %v555, %v547
        %v804 = vpack.c.b16 %v556, %v548
        %v805 = vpack.c.b16 %v557, %v549
        %v806 = vpack.c.b16 %v558, %v550
        %v807 = vpack.c.b16 %v559, %v551
        %v808 = vpack.c.b16 %v560, %v552
        %v809 = vpack.c.b16 %v561, %v553
        %v810 = vpack.c.b16 %v570, %v562
        %v811 = vpack.c.b16 %v571, %v563
        %v812 = vpack.c.b16 %v572, %v564
        %v813 = vpack.c.b16 %v573, %v565
        %v814 = vpack.c.b16 %v574, %v566
        %v815 = vpack.c.b16 %v575, %v567
        %v816 = vpack.c.b16 %v576, %v568
        %v817 = vpack.c.b16 %v577, %v569
        %v818 = vpack.c.b16 %v586, %v578
        %v819 = vpack.c.b16 %v587, %v579
        %v820 = vpack.c.b16 %v588, %v580
        %v821 = vpack.c.b16 %v589, %v581
        %v822 = vpack.c.b16 %v590, %v582
        %v823 = vpack.c.b16 %v591, %v583
        %v824 = vpack.c.b16 %v592, %v584
        %v825 = vpack.c.b16 %v593, %v585
        %v826 = vpack.c.b16 %v602, %v594
        %v827 = vpack.c.b16 %v603, %v595
        %v828 = vpack.c.b16 %v604, %v596
        %v829 = vpack.c.b16 %v605, %v597
        %v830 = vpack.c.b16 %v606, %v598
        %v831 = vpack.c.b16 %v607, %v599
        %v832 = vpack.c.b16 %v608, %v600
        %v833 = vpack.c.b16 %v609, %v601
        %v834 = vpack.c.b16 %v618, %v610
        %v835 = vpack.c.b16 %v619, %v611
        %v836 = vpack.c.b16 %v620, %v612
        %v837 = vpack.c.b16 %v621, %v613
        %v838 = vpack.c.b16 %v622, %v614
        %v839 = vpack.c.b16 %v623, %v615
        %v840 = vpack.c.b16 %v624, %v616
        %v841 = vpack.c.b16 %v625, %v617
        %v842 = vpack.c.b16 %v634, %v626
        %v843 = vpack.c.b16 %v635, %v627
        %v844 = vpack.c.b16 %v636, %v628
        %v845 = vpack.c.b16 %v637, %v629
        %v846 = vpack.c.b16 %v638, %v630
        %v847 = vpack.c.b16 %v639, %v631
        %v848 = vpack.c.b16 %v640, %v632
        %v849 = vpack.c.b16 %v641, %v633
        %v850 = vpack.c.b16 %v650, %v642
        %v851 = vpack.c.b16 %v651, %v643
        %v852 = vpack.c.b16 %v652, %v644
        %v853 = vpack.c.b16 %v653, %v645
        %v854 = vpack.c.b16 %v654, %v646
        %v855 = vpack.c.b16 %v655, %v647
        %v856 = vpack.c.b16 %v656, %v648
        %v857 = vpack.c.b16 %v657, %v649
        %v858 = vpack.c.b16 %v666, %v658
        %v859 = vpack.c.b16 %v667, %v659
        %v860 = vpack.c.b16 %v668, %v660
        %v861 = vpack.c.b16 %v669, %v661
        %v862 = vpack.c.b16 %v670, %v662
        %v863 = vpack.c.b16 %v671, %v663
        %v864 = vpack.c.b16 %v672, %v664
        %v865 = vpack.c.b16 %v673, %v665
        %v866 = vpack.c.b16 %v682, %v674
        %v867 = vpack.c.b16 %v683, %v675
        %v868 = vpack.c.b16 %v684, %v676
        %v869 = vpack.c.b16 %v685, %v677
        %v870 = vpack.c.b16 %v686, %v678
        %v871 = vpack.c.b16 %v687, %v679
        %v872 = vpack.c.b16 %v688, %v680
        %v873 = vpack.c.b16 %v689, %v681
        %v874 = vpack.c.b16 %v698, %v690
        %v875 = vpack.c.b16 %v699, %v691
        %v876 = vpack.c.b16 %v700, %v692
        %v877 = vpack.c.b16 %v701, %v693
        %v878 = vpack.c.b16 %v702, %v694
        %v879 = vpack.c.b16 %v703, %v695
        %v880 = vpack.c.b16 %v704, %v696
        %v881 = vpack.c.b16 %v705, %v697
        %v882 = vpack.c.b16 %v714, %v706
        %v883 = vpack.c.b16 %v715, %v707
        %v884 = vpack.c.b16 %v716, %v708
        %v885 = vpack.c.b16 %v717, %v709
        %v886 = vpack.c.b16 %v718, %v710
        %v887 = vpack.c.b16 %v719, %v711
        %v888 = vpack.c.b16 %v720, %v712
        %v889 = vpack.c.b16 %v721, %v713
        %v890 = vpack.c.b16 %v730, %v722
        %v891 = vpack.c.b16 %v731, %v723
        %v892 = vpack.c.b16 %v732, %v724
        %v893 = vpack.c.b16 %v733, %v725
        %v894 = vpack.c.b16 %v734, %v726
        %v895 = vpack.c.b16 %v735, %v727
        %v896 = vpack.c.b16 %v736, %v728
        %v897 = vpack.c.b16 %v737, %v729
        %v898 = vpack.c.b16 %v746, %v738
        %v899 = vpack.c.b16 %v747, %v739
        %v900 = vpack.c.b16 %v748, %v740
        %v901 = vpack.c.b16 %v749, %v741
        %v902 = vpack.c.b16 %v750, %v742
        %v903 = vpack.c.b16 %v751, %v743
        %v904 = vpack.c.b16 %v752, %v744
        %v905 = vpack.c.b16 %v753, %v745
        %v906 = vpack.c.b16 %v762, %v754
        %v907 = vpack.c.b16 %v763, %v755
        %v908 = vpack.c.b16 %v764, %v756
        %v909 = vpack.c.b16 %v765, %v757
        %v910 = vpack.c.b16 %v766, %v758
        %v911 = vpack.c.b16 %v767, %v759
        %v912 = vpack.c.b16 %v768, %v760
        %v913 = vpack.c.b16 %v769, %v761
        %v914 = vpack.c.b16 %v778, %v770
        %v915 = vpack.c.b16 %v779, %v771
        %v916 = vpack.c.b16 %v780, %v772
        %v917 = vpack.c.b16 %v781, %v773
        %v918 = vpack.c.b16 %v782, %v774
        %v919 = vpack.c.b16 %v783, %v775
        %v920 = vpack.c.b16 %v784, %v776
        %v921 = vpack.c.b16 %v785, %v777
        %v922 = vpack.c.b16 %v794, %v786
        %v923 = vpack.c.b16 %v795, %v787
        %v924 = vpack.c.b16 %v796, %v788
        %v925 = vpack.c.b16 %v797, %v789
        %v926 = vpack.c.b16 %v798, %v790
        %v927 = vpack.c.b16 %v799, %v791
        %v928 = vpack.c.b16 %v800, %v792
        %v929 = vpack.c.b16 %v801, %v793
        %1058 = vmatprep.subr.bf16.mxu0 %v803
        %1059 = vmatpush1.bf16.msra.mxu0 %v802
        %1060 = vmatprep.subr.bf16.mxu0 %v811
        %1061 = vmatpush1.bf16.msra.mxu0 %v810
        %1062 = vmatprep.subr.bf16.mxu0 %v819
        %1063 = vmatpush1.bf16.msra.mxu0 %v818
        %1064 = vmatprep.subr.bf16.mxu0 %v827
        %1065 = vmatpush1.bf16.msra.mxu0 %v826
        %1066 = vmatprep.subr.bf16.mxu0 %v835
        %1067 = vmatpush1.bf16.msra.mxu0 %v834
        %1068 = vmatprep.subr.bf16.mxu0 %v843
        %1069 = vmatpush1.bf16.msra.mxu0 %v842
        %1070 = vmatprep.subr.bf16.mxu0 %v851
        %1071 = vmatpush1.bf16.msra.mxu0 %v850
        %1072 = vmatprep.subr.bf16.mxu0 %v859
        %1073 = vmatpush1.bf16.msra.mxu0 %v858
        %1074 = vmatprep.subr.bf16.mxu0 %v867
        %1075 = vmatpush1.bf16.msra.mxu0 %v866
        %1076 = vmatprep.subr.bf16.mxu0 %v875
        %1077 = vmatpush1.bf16.msra.mxu0 %v874
        %1078 = vmatprep.subr.bf16.mxu0 %v883
        %1079 = vmatpush1.bf16.msra.mxu0 %v882
        %1080 = vmatprep.subr.bf16.mxu0 %v891
        %1081 = vmatpush1.bf16.msra.mxu0 %v890
        %1082 = vmatprep.subr.bf16.mxu0 %v899
        %1083 = vmatpush1.bf16.msra.mxu0 %v898
        %1084 = vmatprep.subr.bf16.mxu0 %v907
        %1085 = vmatpush1.bf16.msra.mxu0 %v906
        %1086 = vmatprep.subr.bf16.mxu0 %v915
        %1087 = vmatpush1.bf16.msra.mxu0 %v914
        %1088 = vmatprep.subr.bf16.mxu0 %v923
        %1089 = vmatpush1.bf16.msra.mxu0 %v922
        %1090 = vmatprep.mubr.bf16.mxu0 %v289
        %1091 = vmatmul.mubr.bf16.gmra.mrb[0].mxu0 %v288
        %v1092 = vpop.f32.mrb[0].mxu0
        %v1093 = vadd.f32 0.0, %v1092
        %v1094 = vpop.f32.mrb[0].mxu0
        %v1095 = vadd.f32 0.0, %v1094
        %v1096 = vpop.f32.mrb[0].mxu0
        %v1097 = vpop.f32.mrb[0].mxu0
        %1098 = vdwg.mxu0
        %1099 = vmatprep.subr.bf16.mxu0 %v805
        %1100 = vmatpush1.bf16.msra.mxu0 %v804
        %1101 = vmatprep.subr.bf16.mxu0 %v813
        %1102 = vmatpush1.bf16.msra.mxu0 %v812
        %1103 = vmatprep.subr.bf16.mxu0 %v821
        %1104 = vmatpush1.bf16.msra.mxu0 %v820
        %1105 = vmatprep.subr.bf16.mxu0 %v829
        %1106 = vmatpush1.bf16.msra.mxu0 %v828
        %1107 = vmatprep.subr.bf16.mxu0 %v837
        %1108 = vmatpush1.bf16.msra.mxu0 %v836
        %1109 = vmatprep.subr.bf16.mxu0 %v845
        %1110 = vmatpush1.bf16.msra.mxu0 %v844
        %1111 = vmatprep.subr.bf16.mxu0 %v853
        %1112 = vmatpush1.bf16.msra.mxu0 %v852
        %1113 = vmatprep.subr.bf16.mxu0 %v861
        %1114 = vmatpush1.bf16.msra.mxu0 %v860
        %1115 = vmatprep.subr.bf16.mxu0 %v869
        %1116 = vmatpush1.bf16.msra.mxu0 %v868
        %1117 = vmatprep.subr.bf16.mxu0 %v877
        %1118 = vmatpush1.bf16.msra.mxu0 %v876
        %1119 = vmatprep.subr.bf16.mxu0 %v885
        %1120 = vmatpush1.bf16.msra.mxu0 %v884
        %1121 = vmatprep.subr.bf16.mxu0 %v893
        %1122 = vmatpush1.bf16.msra.mxu0 %v892
        %1123 = vmatprep.subr.bf16.mxu0 %v901
        %1124 = vmatpush1.bf16.msra.mxu0 %v900
        %1125 = vmatprep.subr.bf16.mxu0 %v909
        %1126 = vmatpush1.bf16.msra.mxu0 %v908
        %1127 = vmatprep.subr.bf16.mxu0 %v917
        %1128 = vmatpush1.bf16.msra.mxu0 %v916
        %1129 = vmatprep.subr.bf16.mxu0 %v925
        %1130 = vmatpush1.bf16.msra.mxu0 %v924
        %1131 = vmatprep.mubr.bf16.mxu0 %v289
        %1132 = vmatmul.mubr.bf16.gmra.mrb[0].mxu0 %v288
        %v1133 = vpop.f32.mrb[0].mxu0
        %v1134 = vadd.f32 0.0, %v1133
        %v1135 = vpop.f32.mrb[0].mxu0
        %v1136 = vadd.f32 0.0, %v1135
        %v1137 = vpop.f32.mrb[0].mxu0
        %v1138 = vpop.f32.mrb[0].mxu0
        %1139 = vdwg.mxu0
        %1140 = vmatprep.subr.bf16.mxu0 %v807
        %1141 = vmatpush1.bf16.msra.mxu0 %v806
        %1142 = vmatprep.subr.bf16.mxu0 %v815
        %1143 = vmatpush1.bf16.msra.mxu0 %v814
        %1144 = vmatprep.subr.bf16.mxu0 %v823
        %1145 = vmatpush1.bf16.msra.mxu0 %v822
        %1146 = vmatprep.subr.bf16.mxu0 %v831
        %1147 = vmatpush1.bf16.msra.mxu0 %v830
        %1148 = vmatprep.subr.bf16.mxu0 %v839
        %1149 = vmatpush1.bf16.msra.mxu0 %v838
        %1150 = vmatprep.subr.bf16.mxu0 %v847
        %1151 = vmatpush1.bf16.msra.mxu0 %v846
        %1152 = vmatprep.subr.bf16.mxu0 %v855
        %1153 = vmatpush1.bf16.msra.mxu0 %v854
        %1154 = vmatprep.subr.bf16.mxu0 %v863
        %1155 = vmatpush1.bf16.msra.mxu0 %v862
        %1156 = vmatprep.subr.bf16.mxu0 %v871
        %1157 = vmatpush1.bf16.msra.mxu0 %v870
        %1158 = vmatprep.subr.bf16.mxu0 %v879
        %1159 = vmatpush1.bf16.msra.mxu0 %v878
        %1160 = vmatprep.subr.bf16.mxu0 %v887
        %1161 = vmatpush1.bf16.msra.mxu0 %v886
        %1162 = vmatprep.subr.bf16.mxu0 %v895
        %1163 = vmatpush1.bf16.msra.mxu0 %v894
        %1164 = vmatprep.subr.bf16.mxu0 %v903
        %1165 = vmatpush1.bf16.msra.mxu0 %v902
        %1166 = vmatprep.subr.bf16.mxu0 %v911
        %1167 = vmatpush1.bf16.msra.mxu0 %v910
        %1168 = vmatprep.subr.bf16.mxu0 %v919
        %1169 = vmatpush1.bf16.msra.mxu0 %v918
        %1170 = vmatprep.subr.bf16.mxu0 %v927
        %1171 = vmatpush1.bf16.msra.mxu0 %v926
        %1172 = vmatprep.mubr.bf16.mxu0 %v289
        %1173 = vmatmul.mubr.bf16.gmra.mrb[0].mxu0 %v288
        %v1174 = vpop.f32.mrb[0].mxu0
        %v1175 = vadd.f32 0.0, %v1174
        %v1176 = vpop.f32.mrb[0].mxu0
        %v1177 = vadd.f32 0.0, %v1176
        %v1178 = vpop.f32.mrb[0].mxu0
        %v1179 = vpop.f32.mrb[0].mxu0
        %1180 = vdwg.mxu0
        %1181 = vmatprep.subr.bf16.mxu0 %v809
        %1182 = vmatpush1.bf16.msra.mxu0 %v808
        %1183 = vmatprep.subr.bf16.mxu0 %v817
        %1184 = vmatpush1.bf16.msra.mxu0 %v816
        %1185 = vmatprep.subr.bf16.mxu0 %v825
        %1186 = vmatpush1.bf16.msra.mxu0 %v824
        %1187 = vmatprep.subr.bf16.mxu0 %v833
        %1188 = vmatpush1.bf16.msra.mxu0 %v832
        %1189 = vmatprep.subr.bf16.mxu0 %v841
        %1190 = vmatpush1.bf16.msra.mxu0 %v840
        %1191 = vmatprep.subr.bf16.mxu0 %v849
        %1192 = vmatpush1.bf16.msra.mxu0 %v848
        %1193 = vmatprep.subr.bf16.mxu0 %v857
        %1194 = vmatpush1.bf16.msra.mxu0 %v856
        %1195 = vmatprep.subr.bf16.mxu0 %v865
        %1196 = vmatpush1.bf16.msra.mxu0 %v864
        %1197 = vmatprep.subr.bf16.mxu0 %v873
        %1198 = vmatpush1.bf16.msra.mxu0 %v872
        %1199 = vmatprep.subr.bf16.mxu0 %v881
        %1200 = vmatpush1.bf16.msra.mxu0 %v880
        %1201 = vmatprep.subr.bf16.mxu0 %v889
        %1202 = vmatpush1.bf16.msra.mxu0 %v888
        %1203 = vmatprep.subr.bf16.mxu0 %v897
        %1204 = vmatpush1.bf16.msra.mxu0 %v896
        %1205 = vmatprep.subr.bf16.mxu0 %v905
        %1206 = vmatpush1.bf16.msra.mxu0 %v904
        %1207 = vmatprep.subr.bf16.mxu0 %v913
        %1208 = vmatpush1.bf16.msra.mxu0 %v912
        %1209 = vmatprep.subr.bf16.mxu0 %v921
        %1210 = vmatpush1.bf16.msra.mxu0 %v920
        %1211 = vmatprep.subr.bf16.mxu0 %v929
        %1212 = vmatpush1.bf16.msra.mxu0 %v928
        %1213 = vmatprep.mubr.bf16.mxu0 %v289
        %1214 = vmatmul.mubr.bf16.gmra.mrb[0].mxu0 %v288
        %v1215 = vpop.f32.mrb[0].mxu0
        %v1216 = vadd.f32 0.0, %v1215
        %v1217 = vpop.f32.mrb[0].mxu0
        %v1218 = vadd.f32 0.0, %v1217
        %v1219 = vpop.f32.mrb[0].mxu0
        %v1220 = vpop.f32.mrb[0].mxu0
        %1221 = vdwg.mxu0
        %v1222 = vlaneseq
        %v1223 = vand.u32 %v1222, 127
        %v1224 = vadd.s32 %v1223, 128
        %v1225 = vadd.s32 %v1223, 256
        %v1226 = vadd.s32 %v1223, 384
        %v1227 = vadd.s32 %v1223, 512
        %v1228 = vadd.s32 %v1223, 640
        %v1229 = vadd.s32 %v1223, 768
        %v1230 = vadd.s32 %v1223, 896
        %v1231 = vand.u32 %v1223, 31
        %v1232 = vand.u32 %v1224, 31
        %v1233 = vand.u32 %v1225, 31
        %v1234 = vand.u32 %v1226, 31
        %v1235 = vand.u32 %v1227, 31
        %v1236 = vand.u32 %v1228, 31
        %v1237 = vand.u32 %v1229, 31
        %v1238 = vand.u32 %v1230, 31
        %vm1239 = vcmp.ge.s32.totalorder %v1223, 32
        %vm1240 = vcmp.ge.s32.totalorder %v1224, 32
        %vm1241 = vcmp.ge.s32.totalorder %v1225, 32
        %vm1242 = vcmp.ge.s32.totalorder %v1226, 32
        %vm1243 = vcmp.ge.s32.totalorder %v1227, 32
        %vm1244 = vcmp.ge.s32.totalorder %v1228, 32
        %vm1245 = vcmp.ge.s32.totalorder %v1229, 32
        %vm1246 = vcmp.ge.s32.totalorder %v1230, 32
        %vm1247 = vcmp.lt.s32.totalorder %v1223, 992
        %vm1248 = vcmp.lt.s32.totalorder %v1224, 992
        %vm1249 = vcmp.lt.s32.totalorder %v1225, 992
        %vm1250 = vcmp.lt.s32.totalorder %v1226, 992
        %vm1251 = vcmp.lt.s32.totalorder %v1227, 992
        %vm1252 = vcmp.lt.s32.totalorder %v1228, 992
        %vm1253 = vcmp.lt.s32.totalorder %v1229, 992
        %vm1254 = vcmp.lt.s32.totalorder %v1230, 992
        %vm1255 = vcmp.ge.s32.totalorder %v1231, 1
        %vm1256 = vcmp.ge.s32.totalorder %v1232, 1
        %vm1257 = vcmp.ge.s32.totalorder %v1233, 1
        %vm1258 = vcmp.ge.s32.totalorder %v1234, 1
        %vm1259 = vcmp.ge.s32.totalorder %v1235, 1
        %vm1260 = vcmp.ge.s32.totalorder %v1236, 1
        %vm1261 = vcmp.ge.s32.totalorder %v1237, 1
        %vm1262 = vcmp.ge.s32.totalorder %v1238, 1
        %vm1263 = vcmp.lt.s32.totalorder %v1231, 31
        %vm1264 = vcmp.lt.s32.totalorder %v1232, 31
        %vm1265 = vcmp.lt.s32.totalorder %v1233, 31
        %vm1266 = vcmp.lt.s32.totalorder %v1234, 31
        %vm1267 = vcmp.lt.s32.totalorder %v1235, 31
        %vm1268 = vcmp.lt.s32.totalorder %v1236, 31
        %vm1269 = vcmp.lt.s32.totalorder %v1237, 31
        %vm1270 = vcmp.lt.s32.totalorder %v1238, 31
        %vm1271 = vmand %vm1239, %vm1255
        %vm1272 = vmand %vm1240, %vm1256
        %vm1273 = vmand %vm1241, %vm1257
        %vm1274 = vmand %vm1242, %vm1258
        %vm1275 = vmand %vm1243, %vm1259
        %vm1276 = vmand %vm1244, %vm1260
        %vm1277 = vmand %vm1245, %vm1261
        %vm1278 = vmand %vm1246, %vm1262
        %vm1279 = vmand %vm1239, %vm1263
        %vm1280 = vmand %vm1240, %vm1264
        %vm1281 = vmand %vm1241, %vm1265
        %vm1282 = vmand %vm1242, %vm1266
        %vm1283 = vmand %vm1243, %vm1267
        %vm1284 = vmand %vm1244, %vm1268
        %vm1285 = vmand %vm1245, %vm1269
        %vm1286 = vmand %vm1246, %vm1270
        %vm1287 = vmand %vm1247, %vm1255
        %vm1288 = vmand %vm1248, %vm1256
        %vm1289 = vmand %vm1249, %vm1257
        %vm1290 = vmand %vm1250, %vm1258
        %vm1291 = vmand %vm1251, %vm1259
        %vm1292 = vmand %vm1252, %vm1260
        %vm1293 = vmand %vm1253, %vm1261
        %vm1294 = vmand %vm1254, %vm1262
        %vm1295 = vmand %vm1247, %vm1263
        %vm1296 = vmand %vm1248, %vm1264
        %vm1297 = vmand %vm1249, %vm1265
        %vm1298 = vmand %vm1250, %vm1266
        %vm1299 = vmand %vm1251, %vm1267
        %vm1300 = vmand %vm1252, %vm1268
        %vm1301 = vmand %vm1253, %vm1269
        %vm1302 = vmand %vm1254, %vm1270
        %1304 = vrot.lane.b32.xlu0 %v1218, 33
        %v1305 = vpop.permute.xlu0 %1304
        %1314 = vrot.lane.b32.xlu0 %v1093, 33
        %v1315 = vpop.permute.xlu0 %1314
        %1316 = vrot.lane.b32.xlu0 %v1095, 33
        %v1317 = vpop.permute.xlu0 %1316
        %1318 = vrot.lane.b32.xlu0 %v1134, 33
        %v1319 = vpop.permute.xlu0 %1318
        %1320 = vrot.lane.b32.xlu0 %v1136, 33
        %v1321 = vpop.permute.xlu0 %1320
        %1322 = vrot.lane.b32.xlu0 %v1175, 33
        %v1323 = vpop.permute.xlu0 %1322
        %1324 = vrot.lane.b32.xlu0 %v1177, 33
        %v1325 = vpop.permute.xlu0 %1324
        %1326 = vrot.lane.b32.xlu0 %v1216, 33
        %v1327 = vpop.permute.xlu0 %1326
        %vm1328 = vcmask 269312
        %v1329 = vsel %vm1328, %v1315, %v1317
        %v1330 = vsel %vm1328, %v1317, %v1319
        %v1331 = vsel %vm1328, %v1319, %v1321
        %v1332 = vsel %vm1328, %v1321, %v1323
        %v1333 = vsel %vm1328, %v1323, %v1325
        %v1334 = vsel %vm1328, %v1325, %v1327
        %v1335 = vsel %vm1328, %v1327, %v1305
        %v1344 = vsel %vm1328, %v1305, %v1315
        %v1345 = vsel %vm1271, 1, 0
        %v1346 = vsel %vm1272, 1, 0
        %v1347 = vsel %vm1273, 1, 0
        %v1348 = vsel %vm1274, 1, 0
        %v1349 = vsel %vm1275, 1, 0
        %v1350 = vsel %vm1276, 1, 0
        %v1351 = vsel %vm1277, 1, 0
        %v1352 = vsel %vm1278, 1, 0
        %vm1353 = vcmp.eq.s32.totalorder %v1345, 1
        %vm1354 = vcmp.eq.s32.totalorder %v1346, 1
        %vm1355 = vcmp.eq.s32.totalorder %v1347, 1
        %vm1356 = vcmp.eq.s32.totalorder %v1348, 1
        %vm1357 = vcmp.eq.s32.totalorder %v1349, 1
        %vm1358 = vcmp.eq.s32.totalorder %v1350, 1
        %vm1359 = vcmp.eq.s32.totalorder %v1351, 1
        %vm1360 = vcmp.eq.s32.totalorder %v1352, 1
        %v1361 = vsel %vm1353, %v1344, 0.0
        %v1362 = vsel %vm1354, %v1329, 0.0
        %v1363 = vsel %vm1355, %v1330, 0.0
        %v1364 = vsel %vm1356, %v1331, 0.0
        %v1365 = vsel %vm1357, %v1332, 0.0
        %v1366 = vsel %vm1358, %v1333, 0.0
        %v1367 = vsel %vm1359, %v1334, 0.0
        %v1368 = vsel %vm1360, %v1335, 0.0
        %1369 = vrot.lane.b32.xlu0 %v1218, 32
        %v1370 = vpop.permute.xlu0 %1369
        %1372 = vrot.lane.b32.xlu0 %v1093, 32
        %v1373 = vpop.permute.xlu0 %1372
        %1374 = vrot.lane.b32.xlu0 %v1095, 32
        %v1375 = vpop.permute.xlu0 %1374
        %1376 = vrot.lane.b32.xlu0 %v1134, 32
        %v1377 = vpop.permute.xlu0 %1376
        %1378 = vrot.lane.b32.xlu0 %v1136, 32
        %v1379 = vpop.permute.xlu0 %1378
        %1380 = vrot.lane.b32.xlu0 %v1175, 32
        %v1381 = vpop.permute.xlu0 %1380
        %1382 = vrot.lane.b32.xlu0 %v1177, 32
        %v1383 = vpop.permute.xlu0 %1382
        %1384 = vrot.lane.b32.xlu0 %v1216, 32
        %v1385 = vpop.permute.xlu0 %1384
        %vm1386 = vcmask 261120
        %v1387 = vsel %vm1386, %v1373, %v1375
        %v1388 = vsel %vm1386, %v1375, %v1377
        %v1389 = vsel %vm1386, %v1377, %v1379
        %v1390 = vsel %vm1386, %v1379, %v1381
        %v1391 = vsel %vm1386, %v1381, %v1383
        %v1392 = vsel %vm1386, %v1383, %v1385
        %v1393 = vsel %vm1386, %v1385, %v1370
        %v1402 = vsel %vm1386, %v1370, %v1373
        %v1403 = vsel %vm1239, 1, 0
        %v1404 = vsel %vm1240, 1, 0
        %v1405 = vsel %vm1241, 1, 0
        %v1406 = vsel %vm1242, 1, 0
        %v1407 = vsel %vm1243, 1, 0
        %v1408 = vsel %vm1244, 1, 0
        %v1409 = vsel %vm1245, 1, 0
        %v1410 = vsel %vm1246, 1, 0
        %vm1411 = vcmp.eq.s32.totalorder %v1403, 1
        %vm1412 = vcmp.eq.s32.totalorder %v1404, 1
        %vm1413 = vcmp.eq.s32.totalorder %v1405, 1
        %vm1414 = vcmp.eq.s32.totalorder %v1406, 1
        %vm1415 = vcmp.eq.s32.totalorder %v1407, 1
        %vm1416 = vcmp.eq.s32.totalorder %v1408, 1
        %vm1417 = vcmp.eq.s32.totalorder %v1409, 1
        %vm1418 = vcmp.eq.s32.totalorder %v1410, 1
        %v1419 = vsel %vm1411, %v1402, 0.0
        %v1420 = vsel %vm1412, %v1387, 0.0
        %v1421 = vsel %vm1413, %v1388, 0.0
        %v1422 = vsel %vm1414, %v1389, 0.0
        %v1423 = vsel %vm1415, %v1390, 0.0
        %v1424 = vsel %vm1416, %v1391, 0.0
        %v1425 = vsel %vm1417, %v1392, 0.0
        %v1426 = vsel %vm1418, %v1393, 0.0
        %1427 = vrot.lane.b32.xlu0 %v1218, 31
        %v1428 = vpop.permute.xlu0 %1427
        %1430 = vrot.lane.b32.xlu0 %v1093, 31
        %v1431 = vpop.permute.xlu0 %1430
        %1432 = vrot.lane.b32.xlu0 %v1095, 31
        %v1433 = vpop.permute.xlu0 %1432
        %1434 = vrot.lane.b32.xlu0 %v1134, 31
        %v1435 = vpop.permute.xlu0 %1434
        %1436 = vrot.lane.b32.xlu0 %v1136, 31
        %v1437 = vpop.permute.xlu0 %1436
        %1438 = vrot.lane.b32.xlu0 %v1175, 31
        %v1439 = vpop.permute.xlu0 %1438
        %1440 = vrot.lane.b32.xlu0 %v1177, 31
        %v1441 = vpop.permute.xlu0 %1440
        %1442 = vrot.lane.b32.xlu0 %v1216, 31
        %v1443 = vpop.permute.xlu0 %1442
        %vm1444 = vcmask 252928
        %v1445 = vsel %vm1444, %v1431, %v1433
        %v1446 = vsel %vm1444, %v1433, %v1435
        %v1447 = vsel %vm1444, %v1435, %v1437
        %v1448 = vsel %vm1444, %v1437, %v1439
        %v1449 = vsel %vm1444, %v1439, %v1441
        %v1450 = vsel %vm1444, %v1441, %v1443
        %v1451 = vsel %vm1444, %v1443, %v1428
        %v1460 = vsel %vm1444, %v1428, %v1431
        %v1461 = vsel %vm1279, 1, 0
        %v1462 = vsel %vm1280, 1, 0
        %v1463 = vsel %vm1281, 1, 0
        %v1464 = vsel %vm1282, 1, 0
        %v1465 = vsel %vm1283, 1, 0
        %v1466 = vsel %vm1284, 1, 0
        %v1467 = vsel %vm1285, 1, 0
        %v1468 = vsel %vm1286, 1, 0
        %vm1469 = vcmp.eq.s32.totalorder %v1461, 1
        %vm1470 = vcmp.eq.s32.totalorder %v1462, 1
        %vm1471 = vcmp.eq.s32.totalorder %v1463, 1
        %vm1472 = vcmp.eq.s32.totalorder %v1464, 1
        %vm1473 = vcmp.eq.s32.totalorder %v1465, 1
        %vm1474 = vcmp.eq.s32.totalorder %v1466, 1
        %vm1475 = vcmp.eq.s32.totalorder %v1467, 1
        %vm1476 = vcmp.eq.s32.totalorder %v1468, 1
        %v1477 = vsel %vm1469, %v1460, 0.0
        %v1478 = vsel %vm1470, %v1445, 0.0
        %v1479 = vsel %vm1471, %v1446, 0.0
        %v1480 = vsel %vm1472, %v1447, 0.0
        %v1481 = vsel %vm1473, %v1448, 0.0
        %v1482 = vsel %vm1474, %v1449, 0.0
        %v1483 = vsel %vm1475, %v1450, 0.0
        %v1484 = vsel %vm1476, %v1451, 0.0
        %1485 = vrot.lane.b32.xlu0 %v1218, 1
        %v1486 = vpop.permute.xlu0 %1485
        %1488 = vrot.lane.b32.xlu0 %v1093, 1
        %v1489 = vpop.permute.xlu0 %1488
        %1490 = vrot.lane.b32.xlu0 %v1095, 1
        %v1491 = vpop.permute.xlu0 %1490
        %1492 = vrot.lane.b32.xlu0 %v1134, 1
        %v1493 = vpop.permute.xlu0 %1492
        %1494 = vrot.lane.b32.xlu0 %v1136, 1
        %v1495 = vpop.permute.xlu0 %1494
        %1496 = vrot.lane.b32.xlu0 %v1175, 1
        %v1497 = vpop.permute.xlu0 %1496
        %1498 = vrot.lane.b32.xlu0 %v1177, 1
        %v1499 = vpop.permute.xlu0 %1498
        %1500 = vrot.lane.b32.xlu0 %v1216, 1
        %v1501 = vpop.permute.xlu0 %1500
        %vm1502 = vcmask 7168
        %v1503 = vsel %vm1502, %v1489, %v1491
        %v1504 = vsel %vm1502, %v1491, %v1493
        %v1505 = vsel %vm1502, %v1493, %v1495
        %v1506 = vsel %vm1502, %v1495, %v1497
        %v1507 = vsel %vm1502, %v1497, %v1499
        %v1508 = vsel %vm1502, %v1499, %v1501
        %v1509 = vsel %vm1502, %v1501, %v1486
        %v1518 = vsel %vm1502, %v1486, %v1489
        %v1519 = vsel %vm1255, 1, 0
        %v1520 = vsel %vm1256, 1, 0
        %v1521 = vsel %vm1257, 1, 0
        %v1522 = vsel %vm1258, 1, 0
        %v1523 = vsel %vm1259, 1, 0
        %v1524 = vsel %vm1260, 1, 0
        %v1525 = vsel %vm1261, 1, 0
        %v1526 = vsel %vm1262, 1, 0
        %vm1527 = vcmp.eq.s32.totalorder %v1519, 1
        %vm1528 = vcmp.eq.s32.totalorder %v1520, 1
        %vm1529 = vcmp.eq.s32.totalorder %v1521, 1
        %vm1530 = vcmp.eq.s32.totalorder %v1522, 1
        %vm1531 = vcmp.eq.s32.totalorder %v1523, 1
        %vm1532 = vcmp.eq.s32.totalorder %v1524, 1
        %vm1533 = vcmp.eq.s32.totalorder %v1525, 1
        %vm1534 = vcmp.eq.s32.totalorder %v1526, 1
        %v1535 = vsel %vm1527, %v1518, 0.0
        %v1536 = vsel %vm1528, %v1503, 0.0
        %v1537 = vsel %vm1529, %v1504, 0.0
        %v1538 = vsel %vm1530, %v1505, 0.0
        %v1539 = vsel %vm1531, %v1506, 0.0
        %v1540 = vsel %vm1532, %v1507, 0.0
        %v1541 = vsel %vm1533, %v1508, 0.0
        %v1542 = vsel %vm1534, %v1509, 0.0
        %1543 = vrot.lane.b32.xlu0 %v1093, 127
        %v1544 = vpop.permute.xlu0 %1543
        %1545 = vrot.lane.b32.xlu0 %v1095, 127
        %v1546 = vpop.permute.xlu0 %1545
        %1547 = vrot.lane.b32.xlu0 %v1134, 127
        %v1548 = vpop.permute.xlu0 %1547
        %1549 = vrot.lane.b32.xlu0 %v1136, 127
        %v1550 = vpop.permute.xlu0 %1549
        %1551 = vrot.lane.b32.xlu0 %v1175, 127
        %v1552 = vpop.permute.xlu0 %1551
        %1553 = vrot.lane.b32.xlu0 %v1177, 127
        %v1554 = vpop.permute.xlu0 %1553
        %1555 = vrot.lane.b32.xlu0 %v1216, 127
        %v1556 = vpop.permute.xlu0 %1555
        %1557 = vrot.lane.b32.xlu0 %v1218, 127
        %v1558 = vpop.permute.xlu0 %1557
        %vm1559 = vcmask 1039360
        %v1560 = vsel %vm1559, %v1544, %v1546
        %v1561 = vsel %vm1559, %v1546, %v1548
        %v1562 = vsel %vm1559, %v1548, %v1550
        %v1563 = vsel %vm1559, %v1550, %v1552
        %v1564 = vsel %vm1559, %v1552, %v1554
        %v1565 = vsel %vm1559, %v1554, %v1556
        %v1566 = vsel %vm1559, %v1556, %v1558
        %v1576 = vsel %vm1559, %v1558, %v1544
        %v1577 = vsel %vm1263, 1, 0
        %v1578 = vsel %vm1264, 1, 0
        %v1579 = vsel %vm1265, 1, 0
        %v1580 = vsel %vm1266, 1, 0
        %v1581 = vsel %vm1267, 1, 0
        %v1582 = vsel %vm1268, 1, 0
        %v1583 = vsel %vm1269, 1, 0
        %v1584 = vsel %vm1270, 1, 0
        %vm1585 = vcmp.eq.s32.totalorder %v1577, 1
        %vm1586 = vcmp.eq.s32.totalorder %v1578, 1
        %vm1587 = vcmp.eq.s32.totalorder %v1579, 1
        %vm1588 = vcmp.eq.s32.totalorder %v1580, 1
        %vm1589 = vcmp.eq.s32.totalorder %v1581, 1
        %vm1590 = vcmp.eq.s32.totalorder %v1582, 1
        %vm1591 = vcmp.eq.s32.totalorder %v1583, 1
        %vm1592 = vcmp.eq.s32.totalorder %v1584, 1
        %v1593 = vsel %vm1585, %v1560, 0.0
        %v1594 = vsel %vm1586, %v1561, 0.0
        %v1595 = vsel %vm1587, %v1562, 0.0
        %v1596 = vsel %vm1588, %v1563, 0.0
        %v1597 = vsel %vm1589, %v1564, 0.0
        %v1598 = vsel %vm1590, %v1565, 0.0
        %v1599 = vsel %vm1591, %v1566, 0.0
        %v1600 = vsel %vm1592, %v1576, 0.0
        %1601 = vrot.lane.b32.xlu0 %v1093, 97
        %v1602 = vpop.permute.xlu0 %1601
        %1603 = vrot.lane.b32.xlu0 %v1095, 97
        %v1604 = vpop.permute.xlu0 %1603
        %1605 = vrot.lane.b32.xlu0 %v1134, 97
        %v1606 = vpop.permute.xlu0 %1605
        %1607 = vrot.lane.b32.xlu0 %v1136, 97
        %v1608 = vpop.permute.xlu0 %1607
        %1609 = vrot.lane.b32.xlu0 %v1175, 97
        %v1610 = vpop.permute.xlu0 %1609
        %1611 = vrot.lane.b32.xlu0 %v1177, 97
        %v1612 = vpop.permute.xlu0 %1611
        %1613 = vrot.lane.b32.xlu0 %v1216, 97
        %v1614 = vpop.permute.xlu0 %1613
        %1615 = vrot.lane.b32.xlu0 %v1218, 97
        %v1616 = vpop.permute.xlu0 %1615
        %vm1617 = vcmask 793600
        %v1618 = vsel %vm1617, %v1602, %v1604
        %v1619 = vsel %vm1617, %v1604, %v1606
        %v1620 = vsel %vm1617, %v1606, %v1608
        %v1621 = vsel %vm1617, %v1608, %v1610
        %v1622 = vsel %vm1617, %v1610, %v1612
        %v1623 = vsel %vm1617, %v1612, %v1614
        %v1624 = vsel %vm1617, %v1614, %v1616
        %v1634 = vsel %vm1617, %v1616, %v1602
        %v1635 = vsel %vm1287, 1, 0
        %v1636 = vsel %vm1288, 1, 0
        %v1637 = vsel %vm1289, 1, 0
        %v1638 = vsel %vm1290, 1, 0
        %v1639 = vsel %vm1291, 1, 0
        %v1640 = vsel %vm1292, 1, 0
        %v1641 = vsel %vm1293, 1, 0
        %v1642 = vsel %vm1294, 1, 0
        %vm1643 = vcmp.eq.s32.totalorder %v1635, 1
        %vm1644 = vcmp.eq.s32.totalorder %v1636, 1
        %vm1645 = vcmp.eq.s32.totalorder %v1637, 1
        %vm1646 = vcmp.eq.s32.totalorder %v1638, 1
        %vm1647 = vcmp.eq.s32.totalorder %v1639, 1
        %vm1648 = vcmp.eq.s32.totalorder %v1640, 1
        %vm1649 = vcmp.eq.s32.totalorder %v1641, 1
        %vm1650 = vcmp.eq.s32.totalorder %v1642, 1
        %v1651 = vsel %vm1643, %v1618, 0.0
        %v1652 = vsel %vm1644, %v1619, 0.0
        %v1653 = vsel %vm1645, %v1620, 0.0
        %v1654 = vsel %vm1646, %v1621, 0.0
        %v1655 = vsel %vm1647, %v1622, 0.0
        %v1656 = vsel %vm1648, %v1623, 0.0
        %v1657 = vsel %vm1649, %v1624, 0.0
        %v1658 = vsel %vm1650, %v1634, 0.0
        %1659 = vrot.lane.b32.xlu0 %v1093, 96
        %v1660 = vpop.permute.xlu0 %1659
        %1661 = vrot.lane.b32.xlu0 %v1095, 96
        %v1662 = vpop.permute.xlu0 %1661
        %1663 = vrot.lane.b32.xlu0 %v1134, 96
        %v1664 = vpop.permute.xlu0 %1663
        %1665 = vrot.lane.b32.xlu0 %v1136, 96
        %v1666 = vpop.permute.xlu0 %1665
        %1667 = vrot.lane.b32.xlu0 %v1175, 96
        %v1668 = vpop.permute.xlu0 %1667
        %1669 = vrot.lane.b32.xlu0 %v1177, 96
        %v1670 = vpop.permute.xlu0 %1669
        %1671 = vrot.lane.b32.xlu0 %v1216, 96
        %v1672 = vpop.permute.xlu0 %1671
        %1673 = vrot.lane.b32.xlu0 %v1218, 96
        %v1674 = vpop.permute.xlu0 %1673
        %vm1675 = vcmask 785408
        %v1676 = vsel %vm1675, %v1660, %v1662
        %v1677 = vsel %vm1675, %v1662, %v1664
        %v1678 = vsel %vm1675, %v1664, %v1666
        %v1679 = vsel %vm1675, %v1666, %v1668
        %v1680 = vsel %vm1675, %v1668, %v1670
        %v1681 = vsel %vm1675, %v1670, %v1672
        %v1682 = vsel %vm1675, %v1672, %v1674
        %v1692 = vsel %vm1675, %v1674, %v1660
        %v1693 = vsel %vm1247, 1, 0
        %v1694 = vsel %vm1248, 1, 0
        %v1695 = vsel %vm1249, 1, 0
        %v1696 = vsel %vm1250, 1, 0
        %v1697 = vsel %vm1251, 1, 0
        %v1698 = vsel %vm1252, 1, 0
        %v1699 = vsel %vm1253, 1, 0
        %v1700 = vsel %vm1254, 1, 0
        %vm1701 = vcmp.eq.s32.totalorder %v1693, 1
        %vm1702 = vcmp.eq.s32.totalorder %v1694, 1
        %vm1703 = vcmp.eq.s32.totalorder %v1695, 1
        %vm1704 = vcmp.eq.s32.totalorder %v1696, 1
        %vm1705 = vcmp.eq.s32.totalorder %v1697, 1
        %vm1706 = vcmp.eq.s32.totalorder %v1698, 1
        %vm1707 = vcmp.eq.s32.totalorder %v1699, 1
        %vm1708 = vcmp.eq.s32.totalorder %v1700, 1
        %v1709 = vsel %vm1701, %v1676, 0.0
        %v1710 = vsel %vm1702, %v1677, 0.0
        %v1711 = vsel %vm1703, %v1678, 0.0
        %v1712 = vsel %vm1704, %v1679, 0.0
        %v1713 = vsel %vm1705, %v1680, 0.0
        %v1714 = vsel %vm1706, %v1681, 0.0
        %v1715 = vsel %vm1707, %v1682, 0.0
        %v1716 = vsel %vm1708, %v1692, 0.0
        %1717 = vrot.lane.b32.xlu0 %v1093, 95
        %v1718 = vpop.permute.xlu0 %1717
        %1719 = vrot.lane.b32.xlu0 %v1095, 95
        %v1720 = vpop.permute.xlu0 %1719
        %1721 = vrot.lane.b32.xlu0 %v1134, 95
        %v1722 = vpop.permute.xlu0 %1721
        %1723 = vrot.lane.b32.xlu0 %v1136, 95
        %v1724 = vpop.permute.xlu0 %1723
        %1725 = vrot.lane.b32.xlu0 %v1175, 95
        %v1726 = vpop.permute.xlu0 %1725
        %1727 = vrot.lane.b32.xlu0 %v1177, 95
        %v1728 = vpop.permute.xlu0 %1727
        %1729 = vrot.lane.b32.xlu0 %v1216, 95
        %v1730 = vpop.permute.xlu0 %1729
        %1731 = vrot.lane.b32.xlu0 %v1218, 95
        %v1732 = vpop.permute.xlu0 %1731
        %vm1733 = vcmask 777216
        %v1734 = vsel %vm1733, %v1718, %v1720
        %v1735 = vsel %vm1733, %v1720, %v1722
        %v1736 = vsel %vm1733, %v1722, %v1724
        %v1737 = vsel %vm1733, %v1724, %v1726
        %v1738 = vsel %vm1733, %v1726, %v1728
        %v1739 = vsel %vm1733, %v1728, %v1730
        %v1740 = vsel %vm1733, %v1730, %v1732
        %v1750 = vsel %vm1733, %v1732, %v1718
        %v1751 = vsel %vm1295, 1, 0
        %v1752 = vsel %vm1296, 1, 0
        %v1753 = vsel %vm1297, 1, 0
        %v1754 = vsel %vm1298, 1, 0
        %v1755 = vsel %vm1299, 1, 0
        %v1756 = vsel %vm1300, 1, 0
        %v1757 = vsel %vm1301, 1, 0
        %v1758 = vsel %vm1302, 1, 0
        %vm1759 = vcmp.eq.s32.totalorder %v1751, 1
        %vm1760 = vcmp.eq.s32.totalorder %v1752, 1
        %vm1761 = vcmp.eq.s32.totalorder %v1753, 1
        %vm1762 = vcmp.eq.s32.totalorder %v1754, 1
        %vm1763 = vcmp.eq.s32.totalorder %v1755, 1
        %vm1764 = vcmp.eq.s32.totalorder %v1756, 1
        %vm1765 = vcmp.eq.s32.totalorder %v1757, 1
        %vm1766 = vcmp.eq.s32.totalorder %v1758, 1
        %v1767 = vsel %vm1759, %v1734, 0.0
        %v1768 = vsel %vm1760, %v1735, 0.0
        %v1769 = vsel %vm1761, %v1736, 0.0
        %v1770 = vsel %vm1762, %v1737, 0.0
        %v1771 = vsel %vm1763, %v1738, 0.0
        %v1772 = vsel %vm1764, %v1739, 0.0
        %v1773 = vsel %vm1765, %v1740, 0.0
        %v1774 = vsel %vm1766, %v1750, 0.0
        %v1783 = vrot.slane %v1419, 4
        %v1784 = vrot.slane %v1420, 4
        %v1785 = vrot.slane %v1421, 4
        %v1786 = vrot.slane %v1422, 4
        %v1787 = vrot.slane %v1423, 4
        %v1788 = vrot.slane %v1424, 4
        %v1789 = vrot.slane %v1425, 4
        %v1790 = vrot.slane %v1426, 4
        %v1807 = vrot.slane %v1535, 4
        %v1808 = vrot.slane %v1536, 4
        %v1809 = vrot.slane %v1537, 4
        %v1810 = vrot.slane %v1538, 4
        %v1811 = vrot.slane %v1539, 4
        %v1812 = vrot.slane %v1540, 4
        %v1813 = vrot.slane %v1541, 4
        %v1814 = vrot.slane %v1542, 4
        %v1831 = vrot.slane %v1593, 4
        %v1832 = vrot.slane %v1594, 4
        %v1833 = vrot.slane %v1595, 4
        %v1834 = vrot.slane %v1596, 4
        %v1835 = vrot.slane %v1597, 4
        %v1836 = vrot.slane %v1598, 4
        %v1837 = vrot.slane %v1599, 4
        %v1838 = vrot.slane %v1600, 4
        %v1855 = vrot.slane %v1709, 4
        %v1856 = vrot.slane %v1710, 4
        %v1857 = vrot.slane %v1711, 4
        %v1858 = vrot.slane %v1712, 4
        %v1859 = vrot.slane %v1713, 4
        %v1860 = vrot.slane %v1714, 4
        %v1861 = vrot.slane %v1715, 4
        %v1862 = vrot.slane %v1716, 4
        %vm1871 = vcmask 1043456
        %v1872 = vsel %vm1871, %v1361, %v1783
        %v1873 = vsel %vm1871, %v1362, %v1784
        %v1874 = vsel %vm1871, %v1363, %v1785
        %v1875 = vsel %vm1871, %v1364, %v1786
        %v1876 = vsel %vm1871, %v1365, %v1787
        %v1877 = vsel %vm1871, %v1366, %v1788
        %v1878 = vsel %vm1871, %v1367, %v1789
        %v1879 = vsel %vm1871, %v1368, %v1790
        %v1880 = vsel %vm1871, %v1477, %v1807
        %v1881 = vsel %vm1871, %v1478, %v1808
        %v1882 = vsel %vm1871, %v1479, %v1809
        %v1883 = vsel %vm1871, %v1480, %v1810
        %v1884 = vsel %vm1871, %v1481, %v1811
        %v1885 = vsel %vm1871, %v1482, %v1812
        %v1886 = vsel %vm1871, %v1483, %v1813
        %v1887 = vsel %vm1871, %v1484, %v1814
        %v1888 = vsel %vm1871, %v1093, %v1831
        %v1889 = vsel %vm1871, %v1095, %v1832
        %v1890 = vsel %vm1871, %v1134, %v1833
        %v1891 = vsel %vm1871, %v1136, %v1834
        %v1892 = vsel %vm1871, %v1175, %v1835
        %v1893 = vsel %vm1871, %v1177, %v1836
        %v1894 = vsel %vm1871, %v1216, %v1837
        %v1895 = vsel %vm1871, %v1218, %v1838
        %v1896 = vsel %vm1871, %v1651, %v1855
        %v1897 = vsel %vm1871, %v1652, %v1856
        %v1898 = vsel %vm1871, %v1653, %v1857
        %v1899 = vsel %vm1871, %v1654, %v1858
        %v1900 = vsel %vm1871, %v1655, %v1859
        %v1901 = vsel %vm1871, %v1656, %v1860
        %v1902 = vsel %vm1871, %v1657, %v1861
        %v1903 = vsel %vm1871, %v1658, %v1862
        %v1904 = vld [vmem:[%s2] sm:$0x3]
        %v1905 = vpack.c.bf16 %v1880, %v1872
        %v1906 = vpack.c.bf16 %v1881, %v1873
        %v1907 = vpack.c.bf16 %v1882, %v1874
        %v1908 = vpack.c.bf16 %v1883, %v1875
        %v1909 = vpack.c.bf16 %v1884, %v1876
        %v1910 = vpack.c.bf16 %v1885, %v1877
        %v1911 = vpack.c.bf16 %v1886, %v1878
        %v1912 = vpack.c.bf16 %v1887, %v1879
        %v1913 = vpack.c.bf16 %v1896, %v1888
        %v1914 = vpack.c.bf16 %v1897, %v1889
        %v1915 = vpack.c.bf16 %v1898, %v1890
        %v1916 = vpack.c.bf16 %v1899, %v1891
        %v1917 = vpack.c.bf16 %v1900, %v1892
        %v1918 = vpack.c.bf16 %v1901, %v1893
        %v1919 = vpack.c.bf16 %v1902, %v1894
        %v1920 = vpack.c.bf16 %v1903, %v1895
        %v1921 = vpack.c.bf16 %v1767, %v1767
        %v1922 = vpack.c.bf16 %v1768, %v1768
        %v1923 = vpack.c.bf16 %v1769, %v1769
        %v1924 = vpack.c.bf16 %v1770, %v1770
        %v1925 = vpack.c.bf16 %v1771, %v1771
        %v1926 = vpack.c.bf16 %v1772, %v1772
        %v1927 = vpack.c.bf16 %v1773, %v1773
        %v1928 = vpack.c.bf16 %v1774, %v1774
        %v1929 = vld [vmem:[%s3] sm:$0xf]
        %1931 = vset.pattern.permute.xlu0 0
        %1932 = vperm.xlu0 %1931, %v1929
        %v1933 = vpop.permute.xlu0 %1932
        %vm1935 = vcmask 293888
        %v1937 = vsel %vm1935, %v1904, 0
        %vm1939 = vcmask 1041408
        %v1941 = vsel %vm1939, %v1921, 0
        %v1944 = vsel %vm1939, %v1922, 0
        %v1947 = vsel %vm1939, %v1923, 0
        %v1950 = vsel %vm1939, %v1924, 0
        %v1953 = vsel %vm1939, %v1925, 0
        %v1956 = vsel %vm1939, %v1926, 0
        %v1959 = vsel %vm1939, %v1927, 0
        %v1962 = vsel %vm1939, %v1928, 0
        %1964 = vmatprep.subr.bf16.mxu0 %v1906
        %1965 = vmatpush1.bf16.msra.mxu0 %v1905
        %1966 = vmatprep.subr.bf16.mxu0 %v1914
        %1967 = vmatpush1.bf16.msra.mxu0 %v1913
        %1968 = vmatprep.subr.bf16.mxu0 %v1944
        %1969 = vmatpush1.bf16.msra.mxu0 %v1941
        %1970 = vmatprep.subr.bf16.mxu0 0
        %1971 = vmatpush1.bf16.msra.mxu0 0
        %1972 = vmatprep.subr.bf16.mxu0 0
        %1973 = vmatpush1.bf16.msra.mxu0 0
        %1974 = vmatprep.subr.bf16.mxu0 0
        %1975 = vmatpush1.bf16.msra.mxu0 0
        %1976 = vmatprep.subr.bf16.mxu0 0
        %1977 = vmatpush1.bf16.msra.mxu0 0
        %1978 = vmatprep.subr.bf16.mxu0 0
        %1979 = vmatpush1.bf16.msra.mxu0 0
        %1980 = vmatprep.subr.bf16.mxu0 0
        %1981 = vmatpush1.bf16.msra.mxu0 0
        %1982 = vmatprep.subr.bf16.mxu0 0
        %1983 = vmatpush1.bf16.msra.mxu0 0
        %1984 = vmatprep.subr.bf16.mxu0 0
        %1985 = vmatpush1.bf16.msra.mxu0 0
        %1986 = vmatprep.subr.bf16.mxu0 0
        %1987 = vmatpush1.bf16.msra.mxu0 0
        %1988 = vmatprep.subr.bf16.mxu0 0
        %1989 = vmatpush1.bf16.msra.mxu0 0
        %1990 = vmatprep.subr.bf16.mxu0 0
        %1991 = vmatpush1.bf16.msra.mxu0 0
        %1992 = vmatprep.subr.bf16.mxu0 0
        %1993 = vmatpush1.bf16.msra.mxu0 0
        %1994 = vmatprep.subr.bf16.mxu0 0
        %1995 = vmatpush1.bf16.msra.mxu0 0
        %1996 = vmatprep.mubr.bf16.mxu0 0
        %1997 = vmatmul.mubr.bf16.gmra.mrb[0].mxu0 %v1937
        %v1998 = vpop.f32.mrb[0].mxu0
        %v1999 = vadd.f32 %v1933, %v1998
        %v2000 = vpop.f32.mrb[0].mxu0
        %v2001 = vadd.f32 %v1933, %v2000
        %v2002 = vpop.f32.mrb[0].mxu0
        %v2003 = vpop.f32.mrb[0].mxu0
        %2004 = vdwg.mxu0
        %2005 = vmatprep.subr.bf16.mxu0 %v1908
        %2006 = vmatpush1.bf16.msra.mxu0 %v1907
        %2007 = vmatprep.subr.bf16.mxu0 %v1916
        %2008 = vmatpush1.bf16.msra.mxu0 %v1915
        %2009 = vmatprep.subr.bf16.mxu0 %v1950
        %2010 = vmatpush1.bf16.msra.mxu0 %v1947
        %2011 = vmatprep.subr.bf16.mxu0 0
        %2012 = vmatpush1.bf16.msra.mxu0 0
        %2013 = vmatprep.subr.bf16.mxu0 0
        %2014 = vmatpush1.bf16.msra.mxu0 0
        %2015 = vmatprep.subr.bf16.mxu0 0
        %2016 = vmatpush1.bf16.msra.mxu0 0
        %2017 = vmatprep.subr.bf16.mxu0 0
        %2018 = vmatpush1.bf16.msra.mxu0 0
        %2019 = vmatprep.subr.bf16.mxu0 0
        %2020 = vmatpush1.bf16.msra.mxu0 0
        %2021 = vmatprep.subr.bf16.mxu0 0
        %2022 = vmatpush1.bf16.msra.mxu0 0
        %2023 = vmatprep.subr.bf16.mxu0 0
        %2024 = vmatpush1.bf16.msra.mxu0 0
        %2025 = vmatprep.subr.bf16.mxu0 0
        %2026 = vmatpush1.bf16.msra.mxu0 0
        %2027 = vmatprep.subr.bf16.mxu0 0
        %2028 = vmatpush1.bf16.msra.mxu0 0
        %2029 = vmatprep.subr.bf16.mxu0 0
        %2030 = vmatpush1.bf16.msra.mxu0 0
        %2031 = vmatprep.subr.bf16.mxu0 0
        %2032 = vmatpush1.bf16.msra.mxu0 0
        %2033 = vmatprep.subr.bf16.mxu0 0
        %2034 = vmatpush1.bf16.msra.mxu0 0
        %2035 = vmatprep.subr.bf16.mxu0 0
        %2036 = vmatpush1.bf16.msra.mxu0 0
        %2037 = vmatprep.mubr.bf16.mxu0 0
        %2038 = vmatmul.mubr.bf16.gmra.mrb[0].mxu0 %v1937
        %v2039 = vpop.f32.mrb[0].mxu0
        %v2040 = vadd.f32 %v1933, %v2039
        %v2041 = vpop.f32.mrb[0].mxu0
        %v2042 = vadd.f32 %v1933, %v2041
        %v2043 = vpop.f32.mrb[0].mxu0
        %v2044 = vpop.f32.mrb[0].mxu0
        %2045 = vdwg.mxu0
        %2046 = vmatprep.subr.bf16.mxu0 %v1910
        %2047 = vmatpush1.bf16.msra.mxu0 %v1909
        %2048 = vmatprep.subr.bf16.mxu0 %v1918
        %2049 = vmatpush1.bf16.msra.mxu0 %v1917
        %2050 = vmatprep.subr.bf16.mxu0 %v1956
        %2051 = vmatpush1.bf16.msra.mxu0 %v1953
        %2052 = vmatprep.subr.bf16.mxu0 0
        %2053 = vmatpush1.bf16.msra.mxu0 0
        %2054 = vmatprep.subr.bf16.mxu0 0
        %2055 = vmatpush1.bf16.msra.mxu0 0
        %2056 = vmatprep.subr.bf16.mxu0 0
        %2057 = vmatpush1.bf16.msra.mxu0 0
        %2058 = vmatprep.subr.bf16.mxu0 0
        %2059 = vmatpush1.bf16.msra.mxu0 0
        %2060 = vmatprep.subr.bf16.mxu0 0
        %2061 = vmatpush1.bf16.msra.mxu0 0
        %2062 = vmatprep.subr.bf16.mxu0 0
        %2063 = vmatpush1.bf16.msra.mxu0 0
        %2064 = vmatprep.subr.bf16.mxu0 0
        %2065 = vmatpush1.bf16.msra.mxu0 0
        %2066 = vmatprep.subr.bf16.mxu0 0
        %2067 = vmatpush1.bf16.msra.mxu0 0
        %2068 = vmatprep.subr.bf16.mxu0 0
        %2069 = vmatpush1.bf16.msra.mxu0 0
        %2070 = vmatprep.subr.bf16.mxu0 0
        %2071 = vmatpush1.bf16.msra.mxu0 0
        %2072 = vmatprep.subr.bf16.mxu0 0
        %2073 = vmatpush1.bf16.msra.mxu0 0
        %2074 = vmatprep.subr.bf16.mxu0 0
        %2075 = vmatpush1.bf16.msra.mxu0 0
        %2076 = vmatprep.subr.bf16.mxu0 0
        %2077 = vmatpush1.bf16.msra.mxu0 0
        %2078 = vmatprep.mubr.bf16.mxu0 0
        %2079 = vmatmul.mubr.bf16.gmra.mrb[0].mxu0 %v1937
        %v2080 = vpop.f32.mrb[0].mxu0
        %v2081 = vadd.f32 %v1933, %v2080
        %v2082 = vpop.f32.mrb[0].mxu0
        %v2083 = vadd.f32 %v1933, %v2082
        %v2084 = vpop.f32.mrb[0].mxu0
        %v2085 = vpop.f32.mrb[0].mxu0
        %2086 = vdwg.mxu0
        %2087 = vmatprep.subr.bf16.mxu0 %v1912
        %2088 = vmatpush1.bf16.msra.mxu0 %v1911
        %2089 = vmatprep.subr.bf16.mxu0 %v1920
        %2090 = vmatpush1.bf16.msra.mxu0 %v1919
        %2091 = vmatprep.subr.bf16.mxu0 %v1962
        %2092 = vmatpush1.bf16.msra.mxu0 %v1959
        %2093 = vmatprep.subr.bf16.mxu0 0
        %2094 = vmatpush1.bf16.msra.mxu0 0
        %2095 = vmatprep.subr.bf16.mxu0 0
        %2096 = vmatpush1.bf16.msra.mxu0 0
        %2097 = vmatprep.subr.bf16.mxu0 0
        %2098 = vmatpush1.bf16.msra.mxu0 0
        %2099 = vmatprep.subr.bf16.mxu0 0
        %2100 = vmatpush1.bf16.msra.mxu0 0
        %2101 = vmatprep.subr.bf16.mxu0 0
        %2102 = vmatpush1.bf16.msra.mxu0 0
        %2103 = vmatprep.subr.bf16.mxu0 0
        %2104 = vmatpush1.bf16.msra.mxu0 0
        %2105 = vmatprep.subr.bf16.mxu0 0
        %2106 = vmatpush1.bf16.msra.mxu0 0
        %2107 = vmatprep.subr.bf16.mxu0 0
        %2108 = vmatpush1.bf16.msra.mxu0 0
        %2109 = vmatprep.subr.bf16.mxu0 0
        %2110 = vmatpush1.bf16.msra.mxu0 0
        %2111 = vmatprep.subr.bf16.mxu0 0
        %2112 = vmatpush1.bf16.msra.mxu0 0
        %2113 = vmatprep.subr.bf16.mxu0 0
        %2114 = vmatpush1.bf16.msra.mxu0 0
        %2115 = vmatprep.subr.bf16.mxu0 0
        %2116 = vmatpush1.bf16.msra.mxu0 0
        %2117 = vmatprep.subr.bf16.mxu0 0
        %2118 = vmatpush1.bf16.msra.mxu0 0
        %2119 = vmatprep.mubr.bf16.mxu0 0
        %2120 = vmatmul.mubr.bf16.gmra.mrb[0].mxu0 %v1937
        %v2121 = vpop.f32.mrb[0].mxu0
        %v2122 = vadd.f32 %v1933, %v2121
        %v2123 = vpop.f32.mrb[0].mxu0
        %v2124 = vadd.f32 %v1933, %v2123
        %v2125 = vpop.f32.mrb[0].mxu0
        %v2126 = vpop.f32.mrb[0].mxu0
        %2127 = vdwg.mxu0
        %v2128 = vmax.f32 %v1999, 0.0
        %v2129 = vmax.f32 %v2001, 0.0
        %v2130 = vmax.f32 %v2040, 0.0
        %v2131 = vmax.f32 %v2042, 0.0
        %v2132 = vmax.f32 %v2081, 0.0
        %v2133 = vmax.f32 %v2083, 0.0
        %v2134 = vmax.f32 %v2122, 0.0
        %v2135 = vmax.f32 %v2124, 0.0
        %2137 = vrot.lane.b32.xlu0 %v2135, 33
        %v2138 = vpop.permute.xlu0 %2137
        %2147 = vrot.lane.b32.xlu0 %v2128, 33
        %v2148 = vpop.permute.xlu0 %2147
        %2149 = vrot.lane.b32.xlu0 %v2129, 33
        %v2150 = vpop.permute.xlu0 %2149
        %2151 = vrot.lane.b32.xlu0 %v2130, 33
        %v2152 = vpop.permute.xlu0 %2151
        %2153 = vrot.lane.b32.xlu0 %v2131, 33
        %v2154 = vpop.permute.xlu0 %2153
        %2155 = vrot.lane.b32.xlu0 %v2132, 33
        %v2156 = vpop.permute.xlu0 %2155
        %2157 = vrot.lane.b32.xlu0 %v2133, 33
        %v2158 = vpop.permute.xlu0 %2157
        %2159 = vrot.lane.b32.xlu0 %v2134, 33
        %v2160 = vpop.permute.xlu0 %2159
        %v2161 = vsel %vm1328, %v2148, %v2150
        %v2162 = vsel %vm1328, %v2150, %v2152
        %v2163 = vsel %vm1328, %v2152, %v2154
        %v2164 = vsel %vm1328, %v2154, %v2156
        %v2165 = vsel %vm1328, %v2156, %v2158
        %v2166 = vsel %vm1328, %v2158, %v2160
        %v2167 = vsel %vm1328, %v2160, %v2138
        %v2176 = vsel %vm1328, %v2138, %v2148
        %v2177 = vsel %vm1353, %v2176, 0.0
        %v2178 = vsel %vm1354, %v2161, 0.0
        %v2179 = vsel %vm1355, %v2162, 0.0
        %v2180 = vsel %vm1356, %v2163, 0.0
        %v2181 = vsel %vm1357, %v2164, 0.0
        %v2182 = vsel %vm1358, %v2165, 0.0
        %v2183 = vsel %vm1359, %v2166, 0.0
        %v2184 = vsel %vm1360, %v2167, 0.0
        %2185 = vrot.lane.b32.xlu0 %v2135, 32
        %v2186 = vpop.permute.xlu0 %2185
        %2188 = vrot.lane.b32.xlu0 %v2128, 32
        %v2189 = vpop.permute.xlu0 %2188
        %2190 = vrot.lane.b32.xlu0 %v2129, 32
        %v2191 = vpop.permute.xlu0 %2190
        %2192 = vrot.lane.b32.xlu0 %v2130, 32
        %v2193 = vpop.permute.xlu0 %2192
        %2194 = vrot.lane.b32.xlu0 %v2131, 32
        %v2195 = vpop.permute.xlu0 %2194
        %2196 = vrot.lane.b32.xlu0 %v2132, 32
        %v2197 = vpop.permute.xlu0 %2196
        %2198 = vrot.lane.b32.xlu0 %v2133, 32
        %v2199 = vpop.permute.xlu0 %2198
        %2200 = vrot.lane.b32.xlu0 %v2134, 32
        %v2201 = vpop.permute.xlu0 %2200
        %v2202 = vsel %vm1386, %v2189, %v2191
        %v2203 = vsel %vm1386, %v2191, %v2193
        %v2204 = vsel %vm1386, %v2193, %v2195
        %v2205 = vsel %vm1386, %v2195, %v2197
        %v2206 = vsel %vm1386, %v2197, %v2199
        %v2207 = vsel %vm1386, %v2199, %v2201
        %v2208 = vsel %vm1386, %v2201, %v2186
        %v2217 = vsel %vm1386, %v2186, %v2189
        %v2218 = vsel %vm1411, %v2217, 0.0
        %v2219 = vsel %vm1412, %v2202, 0.0
        %v2220 = vsel %vm1413, %v2203, 0.0
        %v2221 = vsel %vm1414, %v2204, 0.0
        %v2222 = vsel %vm1415, %v2205, 0.0
        %v2223 = vsel %vm1416, %v2206, 0.0
        %v2224 = vsel %vm1417, %v2207, 0.0
        %v2225 = vsel %vm1418, %v2208, 0.0
        %2226 = vrot.lane.b32.xlu0 %v2135, 31
        %v2227 = vpop.permute.xlu0 %2226
        %2229 = vrot.lane.b32.xlu0 %v2128, 31
        %v2230 = vpop.permute.xlu0 %2229
        %2231 = vrot.lane.b32.xlu0 %v2129, 31
        %v2232 = vpop.permute.xlu0 %2231
        %2233 = vrot.lane.b32.xlu0 %v2130, 31
        %v2234 = vpop.permute.xlu0 %2233
        %2235 = vrot.lane.b32.xlu0 %v2131, 31
        %v2236 = vpop.permute.xlu0 %2235
        %2237 = vrot.lane.b32.xlu0 %v2132, 31
        %v2238 = vpop.permute.xlu0 %2237
        %2239 = vrot.lane.b32.xlu0 %v2133, 31
        %v2240 = vpop.permute.xlu0 %2239
        %2241 = vrot.lane.b32.xlu0 %v2134, 31
        %v2242 = vpop.permute.xlu0 %2241
        %v2243 = vsel %vm1444, %v2230, %v2232
        %v2244 = vsel %vm1444, %v2232, %v2234
        %v2245 = vsel %vm1444, %v2234, %v2236
        %v2246 = vsel %vm1444, %v2236, %v2238
        %v2247 = vsel %vm1444, %v2238, %v2240
        %v2248 = vsel %vm1444, %v2240, %v2242
        %v2249 = vsel %vm1444, %v2242, %v2227
        %v2258 = vsel %vm1444, %v2227, %v2230
        %v2259 = vsel %vm1469, %v2258, 0.0
        %v2260 = vsel %vm1470, %v2243, 0.0
        %v2261 = vsel %vm1471, %v2244, 0.0
        %v2262 = vsel %vm1472, %v2245, 0.0
        %v2263 = vsel %vm1473, %v2246, 0.0
        %v2264 = vsel %vm1474, %v2247, 0.0
        %v2265 = vsel %vm1475, %v2248, 0.0
        %v2266 = vsel %vm1476, %v2249, 0.0
        %2267 = vrot.lane.b32.xlu0 %v2135, 1
        %v2268 = vpop.permute.xlu0 %2267
        %2270 = vrot.lane.b32.xlu0 %v2128, 1
        %v2271 = vpop.permute.xlu0 %2270
        %2272 = vrot.lane.b32.xlu0 %v2129, 1
        %v2273 = vpop.permute.xlu0 %2272
        %2274 = vrot.lane.b32.xlu0 %v2130, 1
        %v2275 = vpop.permute.xlu0 %2274
        %2276 = vrot.lane.b32.xlu0 %v2131, 1
        %v2277 = vpop.permute.xlu0 %2276
        %2278 = vrot.lane.b32.xlu0 %v2132, 1
        %v2279 = vpop.permute.xlu0 %2278
        %2280 = vrot.lane.b32.xlu0 %v2133, 1
        %v2281 = vpop.permute.xlu0 %2280
        %2282 = vrot.lane.b32.xlu0 %v2134, 1
        %v2283 = vpop.permute.xlu0 %2282
        %v2284 = vsel %vm1502, %v2271, %v2273
        %v2285 = vsel %vm1502, %v2273, %v2275
        %v2286 = vsel %vm1502, %v2275, %v2277
        %v2287 = vsel %vm1502, %v2277, %v2279
        %v2288 = vsel %vm1502, %v2279, %v2281
        %v2289 = vsel %vm1502, %v2281, %v2283
        %v2290 = vsel %vm1502, %v2283, %v2268
        %v2299 = vsel %vm1502, %v2268, %v2271
        %v2300 = vsel %vm1527, %v2299, 0.0
        %v2301 = vsel %vm1528, %v2284, 0.0
        %v2302 = vsel %vm1529, %v2285, 0.0
        %v2303 = vsel %vm1530, %v2286, 0.0
        %v2304 = vsel %vm1531, %v2287, 0.0
        %v2305 = vsel %vm1532, %v2288, 0.0
        %v2306 = vsel %vm1533, %v2289, 0.0
        %v2307 = vsel %vm1534, %v2290, 0.0
        %2308 = vrot.lane.b32.xlu0 %v2128, 127
        %v2309 = vpop.permute.xlu0 %2308
        %2310 = vrot.lane.b32.xlu0 %v2129, 127
        %v2311 = vpop.permute.xlu0 %2310
        %2312 = vrot.lane.b32.xlu0 %v2130, 127
        %v2313 = vpop.permute.xlu0 %2312
        %2314 = vrot.lane.b32.xlu0 %v2131, 127
        %v2315 = vpop.permute.xlu0 %2314
        %2316 = vrot.lane.b32.xlu0 %v2132, 127
        %v2317 = vpop.permute.xlu0 %2316
        %2318 = vrot.lane.b32.xlu0 %v2133, 127
        %v2319 = vpop.permute.xlu0 %2318
        %2320 = vrot.lane.b32.xlu0 %v2134, 127
        %v2321 = vpop.permute.xlu0 %2320
        %2322 = vrot.lane.b32.xlu0 %v2135, 127
        %v2323 = vpop.permute.xlu0 %2322
        %v2324 = vsel %vm1559, %v2309, %v2311
        %v2325 = vsel %vm1559, %v2311, %v2313
        %v2326 = vsel %vm1559, %v2313, %v2315
        %v2327 = vsel %vm1559, %v2315, %v2317
        %v2328 = vsel %vm1559, %v2317, %v2319
        %v2329 = vsel %vm1559, %v2319, %v2321
        %v2330 = vsel %vm1559, %v2321, %v2323
        %v2340 = vsel %vm1559, %v2323, %v2309
        %v2341 = vsel %vm1585, %v2324, 0.0
        %v2342 = vsel %vm1586, %v2325, 0.0
        %v2343 = vsel %vm1587, %v2326, 0.0
        %v2344 = vsel %vm1588, %v2327, 0.0
        %v2345 = vsel %vm1589, %v2328, 0.0
        %v2346 = vsel %vm1590, %v2329, 0.0
        %v2347 = vsel %vm1591, %v2330, 0.0
        %v2348 = vsel %vm1592, %v2340, 0.0
        %2349 = vrot.lane.b32.xlu0 %v2128, 97
        %v2350 = vpop.permute.xlu0 %2349
        %2351 = vrot.lane.b32.xlu0 %v2129, 97
        %v2352 = vpop.permute.xlu0 %2351
        %2353 = vrot.lane.b32.xlu0 %v2130, 97
        %v2354 = vpop.permute.xlu0 %2353
        %2355 = vrot.lane.b32.xlu0 %v2131, 97
        %v2356 = vpop.permute.xlu0 %2355
        %2357 = vrot.lane.b32.xlu0 %v2132, 97
        %v2358 = vpop.permute.xlu0 %2357
        %2359 = vrot.lane.b32.xlu0 %v2133, 97
        %v2360 = vpop.permute.xlu0 %2359
        %2361 = vrot.lane.b32.xlu0 %v2134, 97
        %v2362 = vpop.permute.xlu0 %2361
        %2363 = vrot.lane.b32.xlu0 %v2135, 97
        %v2364 = vpop.permute.xlu0 %2363
        %v2365 = vsel %vm1617, %v2350, %v2352
        %v2366 = vsel %vm1617, %v2352, %v2354
        %v2367 = vsel %vm1617, %v2354, %v2356
        %v2368 = vsel %vm1617, %v2356, %v2358
        %v2369 = vsel %vm1617, %v2358, %v2360
        %v2370 = vsel %vm1617, %v2360, %v2362
        %v2371 = vsel %vm1617, %v2362, %v2364
        %v2381 = vsel %vm1617, %v2364, %v2350
        %v2382 = vsel %vm1643, %v2365, 0.0
        %v2383 = vsel %vm1644, %v2366, 0.0
        %v2384 = vsel %vm1645, %v2367, 0.0
        %v2385 = vsel %vm1646, %v2368, 0.0
        %v2386 = vsel %vm1647, %v2369, 0.0
        %v2387 = vsel %vm1648, %v2370, 0.0
        %v2388 = vsel %vm1649, %v2371, 0.0
        %v2389 = vsel %vm1650, %v2381, 0.0
        %2390 = vrot.lane.b32.xlu0 %v2128, 96
        %v2391 = vpop.permute.xlu0 %2390
        %2392 = vrot.lane.b32.xlu0 %v2129, 96
        %v2393 = vpop.permute.xlu0 %2392
        %2394 = vrot.lane.b32.xlu0 %v2130, 96
        %v2395 = vpop.permute.xlu0 %2394
        %2396 = vrot.lane.b32.xlu0 %v2131, 96
        %v2397 = vpop.permute.xlu0 %2396
        %2398 = vrot.lane.b32.xlu0 %v2132, 96
        %v2399 = vpop.permute.xlu0 %2398
        %2400 = vrot.lane.b32.xlu0 %v2133, 96
        %v2401 = vpop.permute.xlu0 %2400
        %2402 = vrot.lane.b32.xlu0 %v2134, 96
        %v2403 = vpop.permute.xlu0 %2402
        %2404 = vrot.lane.b32.xlu0 %v2135, 96
        %v2405 = vpop.permute.xlu0 %2404
        %v2406 = vsel %vm1675, %v2391, %v2393
        %v2407 = vsel %vm1675, %v2393, %v2395
        %v2408 = vsel %vm1675, %v2395, %v2397
        %v2409 = vsel %vm1675, %v2397, %v2399
        %v2410 = vsel %vm1675, %v2399, %v2401
        %v2411 = vsel %vm1675, %v2401, %v2403
        %v2412 = vsel %vm1675, %v2403, %v2405
        %v2422 = vsel %vm1675, %v2405, %v2391
        %v2423 = vsel %vm1701, %v2406, 0.0
        %v2424 = vsel %vm1702, %v2407, 0.0
        %v2425 = vsel %vm1703, %v2408, 0.0
        %v2426 = vsel %vm1704, %v2409, 0.0
        %v2427 = vsel %vm1705, %v2410, 0.0
        %v2428 = vsel %vm1706, %v2411, 0.0
        %v2429 = vsel %vm1707, %v2412, 0.0
        %v2430 = vsel %vm1708, %v2422, 0.0
        %2431 = vrot.lane.b32.xlu0 %v2128, 95
        %v2432 = vpop.permute.xlu0 %2431
        %2433 = vrot.lane.b32.xlu0 %v2129, 95
        %v2434 = vpop.permute.xlu0 %2433
        %2435 = vrot.lane.b32.xlu0 %v2130, 95
        %v2436 = vpop.permute.xlu0 %2435
        %2437 = vrot.lane.b32.xlu0 %v2131, 95
        %v2438 = vpop.permute.xlu0 %2437
        %2439 = vrot.lane.b32.xlu0 %v2132, 95
        %v2440 = vpop.permute.xlu0 %2439
        %2441 = vrot.lane.b32.xlu0 %v2133, 95
        %v2442 = vpop.permute.xlu0 %2441
        %2443 = vrot.lane.b32.xlu0 %v2134, 95
        %v2444 = vpop.permute.xlu0 %2443
        %2445 = vrot.lane.b32.xlu0 %v2135, 95
        %v2446 = vpop.permute.xlu0 %2445
        %v2447 = vsel %vm1733, %v2432, %v2434
        %v2448 = vsel %vm1733, %v2434, %v2436
        %v2449 = vsel %vm1733, %v2436, %v2438
        %v2450 = vsel %vm1733, %v2438, %v2440
        %v2451 = vsel %vm1733, %v2440, %v2442
        %v2452 = vsel %vm1733, %v2442, %v2444
        %v2453 = vsel %vm1733, %v2444, %v2446
        %v2463 = vsel %vm1733, %v2446, %v2432
        %v2464 = vsel %vm1759, %v2447, 0.0
        %v2465 = vsel %vm1760, %v2448, 0.0
        %v2466 = vsel %vm1761, %v2449, 0.0
        %v2467 = vsel %vm1762, %v2450, 0.0
        %v2468 = vsel %vm1763, %v2451, 0.0
        %v2469 = vsel %vm1764, %v2452, 0.0
        %v2470 = vsel %vm1765, %v2453, 0.0
        %v2471 = vsel %vm1766, %v2463, 0.0
        %v2480 = vrot.slane %v2218, 4
        %v2481 = vrot.slane %v2219, 4
        %v2482 = vrot.slane %v2220, 4
        %v2483 = vrot.slane %v2221, 4
        %v2484 = vrot.slane %v2222, 4
        %v2485 = vrot.slane %v2223, 4
        %v2486 = vrot.slane %v2224, 4
        %v2487 = vrot.slane %v2225, 4
        %v2504 = vrot.slane %v2300, 4
        %v2505 = vrot.slane %v2301, 4
        %v2506 = vrot.slane %v2302, 4
        %v2507 = vrot.slane %v2303, 4
        %v2508 = vrot.slane %v2304, 4
        %v2509 = vrot.slane %v2305, 4
        %v2510 = vrot.slane %v2306, 4
        %v2511 = vrot.slane %v2307, 4
        %v2528 = vrot.slane %v2341, 4
        %v2529 = vrot.slane %v2342, 4
        %v2530 = vrot.slane %v2343, 4
        %v2531 = vrot.slane %v2344, 4
        %v2532 = vrot.slane %v2345, 4
        %v2533 = vrot.slane %v2346, 4
        %v2534 = vrot.slane %v2347, 4
        %v2535 = vrot.slane %v2348, 4
        %v2552 = vrot.slane %v2423, 4
        %v2553 = vrot.slane %v2424, 4
        %v2554 = vrot.slane %v2425, 4
        %v2555 = vrot.slane %v2426, 4
        %v2556 = vrot.slane %v2427, 4
        %v2557 = vrot.slane %v2428, 4
        %v2558 = vrot.slane %v2429, 4
        %v2559 = vrot.slane %v2430, 4
        %v2568 = vsel %vm1871, %v2177, %v2480
        %v2569 = vsel %vm1871, %v2178, %v2481
        %v2570 = vsel %vm1871, %v2179, %v2482
        %v2571 = vsel %vm1871, %v2180, %v2483
        %v2572 = vsel %vm1871, %v2181, %v2484
        %v2573 = vsel %vm1871, %v2182, %v2485
        %v2574 = vsel %vm1871, %v2183, %v2486
        %v2575 = vsel %vm1871, %v2184, %v2487
        %v2576 = vsel %vm1871, %v2259, %v2504
        %v2577 = vsel %vm1871, %v2260, %v2505
        %v2578 = vsel %vm1871, %v2261, %v2506
        %v2579 = vsel %vm1871, %v2262, %v2507
        %v2580 = vsel %vm1871, %v2263, %v2508
        %v2581 = vsel %vm1871, %v2264, %v2509
        %v2582 = vsel %vm1871, %v2265, %v2510
        %v2583 = vsel %vm1871, %v2266, %v2511
        %v2584 = vsel %vm1871, %v2128, %v2528
        %v2585 = vsel %vm1871, %v2129, %v2529
        %v2586 = vsel %vm1871, %v2130, %v2530
        %v2587 = vsel %vm1871, %v2131, %v2531
        %v2588 = vsel %vm1871, %v2132, %v2532
        %v2589 = vsel %vm1871, %v2133, %v2533
        %v2590 = vsel %vm1871, %v2134, %v2534
        %v2591 = vsel %vm1871, %v2135, %v2535
        %v2592 = vsel %vm1871, %v2382, %v2552
        %v2593 = vsel %vm1871, %v2383, %v2553
        %v2594 = vsel %vm1871, %v2384, %v2554
        %v2595 = vsel %vm1871, %v2385, %v2555
        %v2596 = vsel %vm1871, %v2386, %v2556
        %v2597 = vsel %vm1871, %v2387, %v2557
        %v2598 = vsel %vm1871, %v2388, %v2558
        %v2599 = vsel %vm1871, %v2389, %v2559
        %v2600 = vrot.slane %v1093, 4
        %v2601 = vrot.slane %v1095, 4
        %v2602 = vrot.slane %v1134, 4
        %v2603 = vrot.slane %v1136, 4
        %v2604 = vrot.slane %v1175, 4
        %v2605 = vrot.slane %v1177, 4
        %v2606 = vrot.slane %v1216, 4
        %v2607 = vrot.slane %v1218, 4
        %v2616 = vsel %vm1871, %v2464, %v2600
        %v2617 = vsel %vm1871, %v2465, %v2601
        %v2618 = vsel %vm1871, %v2466, %v2602
        %v2619 = vsel %vm1871, %v2467, %v2603
        %v2620 = vsel %vm1871, %v2468, %v2604
        %v2621 = vsel %vm1871, %v2469, %v2605
        %v2622 = vsel %vm1871, %v2470, %v2606
        %v2623 = vsel %vm1871, %v2471, %v2607
        %v2624 = vld [vmem:[%s4] sm:$0x3]
        %v2625 = vpack.c.bf16 %v2576, %v2568
        %v2626 = vpack.c.bf16 %v2577, %v2569
        %v2627 = vpack.c.bf16 %v2578, %v2570
        %v2628 = vpack.c.bf16 %v2579, %v2571
        %v2629 = vpack.c.bf16 %v2580, %v2572
        %v2630 = vpack.c.bf16 %v2581, %v2573
        %v2631 = vpack.c.bf16 %v2582, %v2574
        %v2632 = vpack.c.bf16 %v2583, %v2575
        %v2633 = vpack.c.bf16 %v2592, %v2584
        %v2634 = vpack.c.bf16 %v2593, %v2585
        %v2635 = vpack.c.bf16 %v2594, %v2586
        %v2636 = vpack.c.bf16 %v2595, %v2587
        %v2637 = vpack.c.bf16 %v2596, %v2588
        %v2638 = vpack.c.bf16 %v2597, %v2589
        %v2639 = vpack.c.bf16 %v2598, %v2590
        %v2640 = vpack.c.bf16 %v2599, %v2591
        %v2641 = vpack.c.bf16 %v2616, %v2616
        %v2642 = vpack.c.bf16 %v2617, %v2617
        %v2643 = vpack.c.bf16 %v2618, %v2618
        %v2644 = vpack.c.bf16 %v2619, %v2619
        %v2645 = vpack.c.bf16 %v2620, %v2620
        %v2646 = vpack.c.bf16 %v2621, %v2621
        %v2647 = vpack.c.bf16 %v2622, %v2622
        %v2648 = vpack.c.bf16 %v2623, %v2623
        %v2649 = vld [vmem:[%s5] sm:$0xf]
        %2651 = vset.pattern.permute.xlu0 0
        %2652 = vperm.xlu0 %2651, %v2649
        %v2653 = vpop.permute.xlu0 %2652
        %vm2655 = vcmask 326656
        %v2657 = vsel %vm2655, %v2624, 0
        %v2660 = vsel %vm1871, %v2641, 0
        %v2663 = vsel %vm1871, %v2642, 0
        %v2666 = vsel %vm1871, %v2643, 0
        %v2669 = vsel %vm1871, %v2644, 0
        %v2672 = vsel %vm1871, %v2645, 0
        %v2675 = vsel %vm1871, %v2646, 0
        %v2678 = vsel %vm1871, %v2647, 0
        %v2681 = vsel %vm1871, %v2648, 0
        %2683 = vmatprep.subr.bf16.mxu0 %v2626
        %2684 = vmatpush1.bf16.msra.mxu0 %v2625
        %2685 = vmatprep.subr.bf16.mxu0 %v2634
        %2686 = vmatpush1.bf16.msra.mxu0 %v2633
        %2687 = vmatprep.subr.bf16.mxu0 %v2663
        %2688 = vmatpush1.bf16.msra.mxu0 %v2660
        %2689 = vmatprep.subr.bf16.mxu0 0
        %2690 = vmatpush1.bf16.msra.mxu0 0
        %2691 = vmatprep.subr.bf16.mxu0 0
        %2692 = vmatpush1.bf16.msra.mxu0 0
        %2693 = vmatprep.subr.bf16.mxu0 0
        %2694 = vmatpush1.bf16.msra.mxu0 0
        %2695 = vmatprep.subr.bf16.mxu0 0
        %2696 = vmatpush1.bf16.msra.mxu0 0
        %2697 = vmatprep.subr.bf16.mxu0 0
        %2698 = vmatpush1.bf16.msra.mxu0 0
        %2699 = vmatprep.subr.bf16.mxu0 0
        %2700 = vmatpush1.bf16.msra.mxu0 0
        %2701 = vmatprep.subr.bf16.mxu0 0
        %2702 = vmatpush1.bf16.msra.mxu0 0
        %2703 = vmatprep.subr.bf16.mxu0 0
        %2704 = vmatpush1.bf16.msra.mxu0 0
        %2705 = vmatprep.subr.bf16.mxu0 0
        %2706 = vmatpush1.bf16.msra.mxu0 0
        %2707 = vmatprep.subr.bf16.mxu0 0
        %2708 = vmatpush1.bf16.msra.mxu0 0
        %2709 = vmatprep.subr.bf16.mxu0 0
        %2710 = vmatpush1.bf16.msra.mxu0 0
        %2711 = vmatprep.subr.bf16.mxu0 0
        %2712 = vmatpush1.bf16.msra.mxu0 0
        %2713 = vmatprep.subr.bf16.mxu0 0
        %2714 = vmatpush1.bf16.msra.mxu0 0
        %2715 = vmatprep.mubr.bf16.mxu0 0
        %2716 = vmatmul.mubr.bf16.gmra.mrb[0].mxu0 %v2657
        %v2717 = vpop.f32.mrb[0].mxu0
        %v2718 = vadd.f32 %v2653, %v2717
        %v2719 = vpop.f32.mrb[0].mxu0
        %v2720 = vadd.f32 %v2653, %v2719
        %v2721 = vpop.f32.mrb[0].mxu0
        %v2722 = vpop.f32.mrb[0].mxu0
        %2723 = vdwg.mxu0
        %2724 = vmatprep.subr.bf16.mxu0 %v2628
        %2725 = vmatpush1.bf16.msra.mxu0 %v2627
        %2726 = vmatprep.subr.bf16.mxu0 %v2636
        %2727 = vmatpush1.bf16.msra.mxu0 %v2635
        %2728 = vmatprep.subr.bf16.mxu0 %v2669
        %2729 = vmatpush1.bf16.msra.mxu0 %v2666
        %2730 = vmatprep.subr.bf16.mxu0 0
        %2731 = vmatpush1.bf16.msra.mxu0 0
        %2732 = vmatprep.subr.bf16.mxu0 0
        %2733 = vmatpush1.bf16.msra.mxu0 0
        %2734 = vmatprep.subr.bf16.mxu0 0
        %2735 = vmatpush1.bf16.msra.mxu0 0
        %2736 = vmatprep.subr.bf16.mxu0 0
        %2737 = vmatpush1.bf16.msra.mxu0 0
        %2738 = vmatprep.subr.bf16.mxu0 0
        %2739 = vmatpush1.bf16.msra.mxu0 0
        %2740 = vmatprep.subr.bf16.mxu0 0
        %2741 = vmatpush1.bf16.msra.mxu0 0
        %2742 = vmatprep.subr.bf16.mxu0 0
        %2743 = vmatpush1.bf16.msra.mxu0 0
        %2744 = vmatprep.subr.bf16.mxu0 0
        %2745 = vmatpush1.bf16.msra.mxu0 0
        %2746 = vmatprep.subr.bf16.mxu0 0
        %2747 = vmatpush1.bf16.msra.mxu0 0
        %2748 = vmatprep.subr.bf16.mxu0 0
        %2749 = vmatpush1.bf16.msra.mxu0 0
        %2750 = vmatprep.subr.bf16.mxu0 0
        %2751 = vmatpush1.bf16.msra.mxu0 0
        %2752 = vmatprep.subr.bf16.mxu0 0
        %2753 = vmatpush1.bf16.msra.mxu0 0
        %2754 = vmatprep.subr.bf16.mxu0 0
        %2755 = vmatpush1.bf16.msra.mxu0 0
        %2756 = vmatprep.mubr.bf16.mxu0 0
        %2757 = vmatmul.mubr.bf16.gmra.mrb[0].mxu0 %v2657
        %v2758 = vpop.f32.mrb[0].mxu0
        %v2759 = vadd.f32 %v2653, %v2758
        %v2760 = vpop.f32.mrb[0].mxu0
        %v2761 = vadd.f32 %v2653, %v2760
        %v2762 = vpop.f32.mrb[0].mxu0
        %v2763 = vpop.f32.mrb[0].mxu0
        %2764 = vdwg.mxu0
        %2765 = vmatprep.subr.bf16.mxu0 %v2630
        %2766 = vmatpush1.bf16.msra.mxu0 %v2629
        %2767 = vmatprep.subr.bf16.mxu0 %v2638
        %2768 = vmatpush1.bf16.msra.mxu0 %v2637
        %2769 = vmatprep.subr.bf16.mxu0 %v2675
        %2770 = vmatpush1.bf16.msra.mxu0 %v2672
        %2771 = vmatprep.subr.bf16.mxu0 0
        %2772 = vmatpush1.bf16.msra.mxu0 0
        %2773 = vmatprep.subr.bf16.mxu0 0
        %2774 = vmatpush1.bf16.msra.mxu0 0
        %2775 = vmatprep.subr.bf16.mxu0 0
        %2776 = vmatpush1.bf16.msra.mxu0 0
        %2777 = vmatprep.subr.bf16.mxu0 0
        %2778 = vmatpush1.bf16.msra.mxu0 0
        %2779 = vmatprep.subr.bf16.mxu0 0
        %2780 = vmatpush1.bf16.msra.mxu0 0
        %2781 = vmatprep.subr.bf16.mxu0 0
        %2782 = vmatpush1.bf16.msra.mxu0 0
        %2783 = vmatprep.subr.bf16.mxu0 0
        %2784 = vmatpush1.bf16.msra.mxu0 0
        %2785 = vmatprep.subr.bf16.mxu0 0
        %2786 = vmatpush1.bf16.msra.mxu0 0
        %2787 = vmatprep.subr.bf16.mxu0 0
        %2788 = vmatpush1.bf16.msra.mxu0 0
        %2789 = vmatprep.subr.bf16.mxu0 0
        %2790 = vmatpush1.bf16.msra.mxu0 0
        %2791 = vmatprep.subr.bf16.mxu0 0
        %2792 = vmatpush1.bf16.msra.mxu0 0
        %2793 = vmatprep.subr.bf16.mxu0 0
        %2794 = vmatpush1.bf16.msra.mxu0 0
        %2795 = vmatprep.subr.bf16.mxu0 0
        %2796 = vmatpush1.bf16.msra.mxu0 0
        %2797 = vmatprep.mubr.bf16.mxu0 0
        %2798 = vmatmul.mubr.bf16.gmra.mrb[0].mxu0 %v2657
        %v2799 = vpop.f32.mrb[0].mxu0
        %v2800 = vadd.f32 %v2653, %v2799
        %v2801 = vpop.f32.mrb[0].mxu0
        %v2802 = vadd.f32 %v2653, %v2801
        %v2803 = vpop.f32.mrb[0].mxu0
        %v2804 = vpop.f32.mrb[0].mxu0
        %2805 = vdwg.mxu0
        %2806 = vmatprep.subr.bf16.mxu0 %v2632
        %2807 = vmatpush1.bf16.msra.mxu0 %v2631
        %2808 = vmatprep.subr.bf16.mxu0 %v2640
        %2809 = vmatpush1.bf16.msra.mxu0 %v2639
        %2810 = vmatprep.subr.bf16.mxu0 %v2681
        %2811 = vmatpush1.bf16.msra.mxu0 %v2678
        %2812 = vmatprep.subr.bf16.mxu0 0
        %2813 = vmatpush1.bf16.msra.mxu0 0
        %2814 = vmatprep.subr.bf16.mxu0 0
        %2815 = vmatpush1.bf16.msra.mxu0 0
        %2816 = vmatprep.subr.bf16.mxu0 0
        %2817 = vmatpush1.bf16.msra.mxu0 0
        %2818 = vmatprep.subr.bf16.mxu0 0
        %2819 = vmatpush1.bf16.msra.mxu0 0
        %2820 = vmatprep.subr.bf16.mxu0 0
        %2821 = vmatpush1.bf16.msra.mxu0 0
        %2822 = vmatprep.subr.bf16.mxu0 0
        %2823 = vmatpush1.bf16.msra.mxu0 0
        %2824 = vmatprep.subr.bf16.mxu0 0
        %2825 = vmatpush1.bf16.msra.mxu0 0
        %2826 = vmatprep.subr.bf16.mxu0 0
        %2827 = vmatpush1.bf16.msra.mxu0 0
        %2828 = vmatprep.subr.bf16.mxu0 0
        %2829 = vmatpush1.bf16.msra.mxu0 0
        %2830 = vmatprep.subr.bf16.mxu0 0
        %2831 = vmatpush1.bf16.msra.mxu0 0
        %2832 = vmatprep.subr.bf16.mxu0 0
        %2833 = vmatpush1.bf16.msra.mxu0 0
        %2834 = vmatprep.subr.bf16.mxu0 0
        %2835 = vmatpush1.bf16.msra.mxu0 0
        %2836 = vmatprep.subr.bf16.mxu0 0
        %2837 = vmatpush1.bf16.msra.mxu0 0
        %2838 = vmatprep.mubr.bf16.mxu0 0
        %2839 = vmatmul.mubr.bf16.gmra.mrb[0].mxu0 %v2657
        %v2840 = vpop.f32.mrb[0].mxu0
        %v2841 = vadd.f32 %v2653, %v2840
        %v2842 = vpop.f32.mrb[0].mxu0
        %v2843 = vadd.f32 %v2653, %v2842
        %v2844 = vpop.f32.mrb[0].mxu0
        %v2845 = vpop.f32.mrb[0].mxu0
        %2846 = vdwg.mxu0
        %v2847 = vmax.f32 %v2718, 0.0
        %v2848 = vmax.f32 %v2720, 0.0
        %v2849 = vmax.f32 %v2759, 0.0
        %v2850 = vmax.f32 %v2761, 0.0
        %v2851 = vmax.f32 %v2800, 0.0
        %v2852 = vmax.f32 %v2802, 0.0
        %v2853 = vmax.f32 %v2841, 0.0
        %v2854 = vmax.f32 %v2843, 0.0
        %v2863 = vcombine.low %v2847, %v2848
        %v2864 = vcombine.low %v2849, %v2850
        %v2865 = vcombine.low %v2851, %v2852
        %v2866 = vcombine.low %v2853, %v2854
        %2871 = vst [vmem:[%s282] sm:$0xff] %v2863
        %2872 = vst [vmem:[%s282 + $0x8] sm:$0xff] %v2864
        %2873 = vst [vmem:[%s282 + $0x10] sm:$0xff] %v2865
        %2874 = vst [vmem:[%s282 + $0x18] sm:$0xff] %v2866
        %s2875 = sand.u32 %s163, 1
        %s2876 = scalar_lea.sflag [#allocation4], %s2875
        %s2877 = sand.u32 %s163, 1
        %s2878 = smul.addr %s2877, 32
        %s2879 = scalar_lea.vmem [#allocation7], %s2878
        // Predicated region
        $region53: #{tpu_custom_call.1} parent=43 // pred_check
          %p2880 = pneg %p173
        $region54: #{tpu_custom_call.1} parent=43 // pred_check_branch
          %2882 = sbr.rel (%p2880) target = $region56
        $region55: #{tpu_custom_call.1} parent=43 // pred_region
          %s2884 = ssub.s32 512, 512
          %2885 = vsyncadd %s2876, %s2884
          %s2886 = smul.addr %s24, 8
          %s2887 = smul.addr %s2886, 64
          %s2888 = scalar_lea.hbm %s6, %s2887
          %s2890 = sshll.u32 %s2879, 4
          %s2891 = int_to_ptr.vmem [resolvable:$true] %s2890
          %2893 = dma.vmem_to_hbm [thread:$0]  %s2891, 512, %s2888, %s2876
        $region56: #{tpu_custom_call.1} parent=43 // pred_fallthru
          _
      $region44: #{tpu_custom_call.1} parent=5 // pred_fallthru
        _
      %p2894 = scmp.le.s32.totalorder 2, %s19
      // Predicated region
      $region57: #{tpu_custom_call.1} parent=5 // pred_check
        %p2895 = pneg %p2894
      $region58: #{tpu_custom_call.1} parent=5 // pred_check_branch
        %2897 = sbr.rel (%p2895) target = $region60
      $region59: #{tpu_custom_call.1} parent=5 // pred_region
        %s2898 = ssub.s32 %s19, 2
        // Predicated region
        $region61: #{tpu_custom_call.1} parent=59 // pred_check
          %p2899 = pneg %p179
        $region62: #{tpu_custom_call.1} parent=59 // pred_check_branch
          %2901 = sbr.rel (%p2899) target = $region64
        $region63: #{tpu_custom_call.1} parent=59 // pred_region
          %s2902 = sand.u32 %s164, 1
          %s2903 = scalar_lea.sflag [#allocation4], %s2902
          %s2904 = sand.u32 %s164, 1
          %s2905 = smul.addr %s2904, 32
          %s2906 = scalar_lea.vmem [#allocation7], %s2905
          %2907 = dma.done %s2903, 512
        $region64: #{tpu_custom_call.1} parent=59 // pred_fallthru
          _
      $region60: #{tpu_custom_call.1} parent=5 // pred_fallthru
        _
    $region6: #{tpu_custom_call.1} parent=1 // loop_footer
      %s23 = sadd.s32 1, %s19
    $region7: #{tpu_custom_call.1} parent=1 // loop_footer_branch
      %18 = sbr.rel target = $region3
    $region8: #{tpu_custom_call.1} parent=1 // loop_exit
      _
    %2908 = vsyncpa [#allocation3], 1
    %s2909 = scalar_lea.sflag [#allocation3], 1
    %2910 = vsyncpa %s2909, 1
    %2911 = vsyncpa [#allocation6], 1
    %2912 = vsyncpa [#allocation4], 1
    %s2913 = scalar_lea.sflag [#allocation4], 1
    %2914 = vsyncpa %s2913, 1

</llo_original>
